<compile_context>
chip_gen: v7x
topology: tpu7x:2x2x1
jax: 0.10.0
libtpu: 0.0.40
codegen_flags: <defaults>
</compile_context>

<pallas_src>
import jax
import jax.numpy as jnp
from jax.experimental import pallas as pl
from jax.experimental.pallas import tpu as pltpu


def _mlp_kernel(w_ref, b_ref, w7_ref, b7_ref, x_ref, o_ref):
    """w_ref: (96,) SMEM  = six 4x4 weights, flat index layer*16 + k*4 + n
       b_ref: (24,) SMEM  = six 4-vector biases, flat index layer*4 + n
       w7_ref: (4,) SMEM, b7_ref: (1,) SMEM  = final Linear(4,1)
       x_ref: (4, TB) VMEM (batch on lanes), o_ref: (1, TB) VMEM."""
    h = x_ref[...]                                    # (4, TB) f32

    # 6x [Linear(4,4) + ReLU] as unrolled VPU FMAs with SMEM scalar weights.
    for layer in range(6):
        rows = []
        for n in range(4):
            acc = h[0:1, :] * w_ref[layer * 16 + 0 * 4 + n]
            for k in range(1, 4):
                acc = acc + h[k:k + 1, :] * w_ref[layer * 16 + k * 4 + n]
            acc = acc + b_ref[layer * 4 + n]
            rows.append(jnp.maximum(acc, 0.0))        # ReLU
        h = jnp.concatenate(rows, axis=0)             # (4, TB)

    # Dropout(p=0.5): eval mode -> identity.
    # TODO(synk): training-mode dropout (random mask + 1/(1-p) scale) not implemented.

    # Final Linear(4,1) + Sigmoid, lane-dense (1, TB) output.
    logit = h[0:1, :] * w7_ref[0]
    for k in range(1, 4):
        logit = logit + h[k:k + 1, :] * w7_ref[k]
    logit = logit + b7_ref[0]
    o_ref[...] = jax.nn.sigmoid(logit)


def _round_up(x, m):
    return ((x + m - 1) // m) * m


def module_forward(x, packed_params, *, tile_b=1024):
    """x: (B, 4) float32. packed_params = (w_stack(96,), b_stack(24,), w7(4,), b7(1,))."""
    B = x.shape[0]
    w_stack, b_stack, w7, b7 = packed_params

    # Batch onto the lane axis.
    xt = x.astype(jnp.float32).T                      # (4, B)

    # Choose a lane-aligned tile and pad the batch to a multiple of it.
    if B <= tile_b:
        TB = max(_round_up(B, 128), 128)
        Bp = TB
    else:
        TB = tile_b                                    # multiple of 128
        Bp = _round_up(B, TB)
    if Bp != B:
        xt = jnp.pad(xt, ((0, 0), (0, Bp - B)))

    grid = (Bp // TB,)
    smem_spec = pl.BlockSpec(memory_space=pltpu.MemorySpace.SMEM)

    out = pl.pallas_call(
        _mlp_kernel,
        out_shape=jax.ShapeDtypeStruct((1, Bp), jnp.float32),
        grid=grid,
        in_specs=[
            smem_spec,                                            # w_stack
            smem_spec,                                            # b_stack
            smem_spec,                                            # w7
            smem_spec,                                            # b7
            pl.BlockSpec((4, TB), lambda i: (0, i)),              # x (4, Bp)
        ],
        out_specs=pl.BlockSpec((1, TB), lambda i: (0, i)),        # (1, Bp)
        compiler_params=pltpu.CompilerParams(
            dimension_semantics=("parallel",)),
        cost_estimate=pl.CostEstimate(
            flops=224 * Bp, transcendentals=Bp, bytes_accessed=20 * Bp),
    )(w_stack, b_stack, w7, b7, xt)

    return out[:, :B].T                                # (B, 1)


def init_params(key):
    """Mimics nn.Linear's uniform(-1/sqrt(fan_in), +1/sqrt(fan_in)) init.
    Returns (packed params for the kernel, per-layer (ws, bs) for the reference)."""
    dims = [(4, 4)] * 6 + [(4, 1)]                    # (in_features, out_features)
    ws, bs = [], []
    for (fan_in, fan_out) in dims:
        key, kw, kb = jax.random.split(key, 3)
        bound = 1.0 / jnp.sqrt(jnp.float32(fan_in))
        # stored as (in, out) so reference is h @ w + b; kernel reads w[k, n].
        w = jax.random.uniform(kw, (fan_in, fan_out), jnp.float32, -bound, bound)
        b = jax.random.uniform(kb, (fan_out,), jnp.float32, -bound, bound)
        ws.append(w)
        bs.append(b)
    w_stack = jnp.concatenate([w.reshape(-1) for w in ws[:6]])   # (96,), [layer, k, n]
    b_stack = jnp.concatenate(bs[:6])                            # (24,), [layer, n]
    w7 = ws[6].reshape(-1)                                       # (4,)
    b7 = bs[6]                                                   # (1,)
    return (w_stack, b_stack, w7, b7), (ws, bs)


def reference_forward(x, ws, bs):
    """Pure-JAX reference."""
    h = x
    for i in range(6):
        h = jnp.maximum(h @ ws[i] + bs[i], 0.0)
    return jax.nn.sigmoid(h @ ws[6] + bs[6])


if __name__ == "__main__":
    key = jax.random.PRNGKey(0)
    key, kx1, kx2 = jax.random.split(key, 3)
    packed, (ws, bs) = init_params(key)

    # Small batch (single tile path).
    B1 = 8
    x1 = jax.random.normal(kx1, (B1, 4), dtype=jnp.float32)
    out1 = jax.block_until_ready(module_forward(x1, packed))
    ref1 = reference_forward(x1, ws, bs)
    assert out1.shape == (B1, 1), out1.shape
    assert jnp.allclose(out1, ref1, atol=1e-5, rtol=1e-5)

    # Larger, non-multiple batch (exercises the grid + tail padding path).
    B2 = 3000
    x2 = jax.random.normal(kx2, (B2, 4), dtype=jnp.float32)
    out2 = jax.block_until_ready(module_forward(x2, packed, tile_b=1024))
    ref2 = reference_forward(x2, ws, bs)
    assert out2.shape == (B2, 1), out2.shape
    assert jnp.allclose(out2, ref2, atol=1e-5, rtol=1e-5)

    print("KERNEL_OK")
</pallas_src>

<mosaic_0001>
module attributes {stable_mosaic.version = 11 : i64} {
  func.func @_mlp_kernel(%arg0: i32, %arg1: memref<96xf32, #tpu.memory_space<smem>>, %arg2: memref<24xf32, #tpu.memory_space<smem>>, %arg3: memref<4xf32, #tpu.memory_space<smem>>, %arg4: memref<1xf32, #tpu.memory_space<smem>>, %arg5: memref<4x128xf32, #tpu.memory_space<vmem>>, %arg6: memref<1x128xf32, #tpu.memory_space<vmem>>) attributes {dimension_semantics = [#tpu.dimension_semantics<parallel>], iteration_bounds = array<i64: 1>, scalar_prefetch = 0 : i64, scratch_operands = 0 : i64, tpu.core_type = #tpu.core_type<tc>, window_params = [{transform_indices = @transform_0, window_bounds = array<i64: 96>}, {transform_indices = @transform_1, window_bounds = array<i64: 24>}, {transform_indices = @transform_2, window_bounds = array<i64: 4>}, {transform_indices = @transform_3, window_bounds = array<i64: 1>}, {transform_indices = @transform_4, window_bounds = array<i64: 4, 128>}, {transform_indices = @transform_5, window_bounds = array<i64: 1, 128>}]} {
    %c0 = arith.constant 0 : index
    %c0_0 = arith.constant 0 : index
    %0 = vector.load %arg5[%c0, %c0_0] : memref<4x128xf32, #tpu.memory_space<vmem>>, vector<4x128xf32>
    %1 = vector.extract_strided_slice %0 {offsets = [0, 0], sizes = [1, 128], strides = [1, 1]} : vector<4x128xf32> to vector<1x128xf32>
    %c0_1 = arith.constant 0 : index
    %2 = memref.load %arg1[%c0_1] : memref<96xf32, #tpu.memory_space<smem>>
    %3 = vector.broadcast %2 : f32 to vector<1x128xf32>
    %4 = arith.mulf %1, %3 : vector<1x128xf32>
    %5 = vector.extract_strided_slice %0 {offsets = [1, 0], sizes = [1, 128], strides = [1, 1]} : vector<4x128xf32> to vector<1x128xf32>
    %c4 = arith.constant 4 : index
    %6 = memref.load %arg1[%c4] : memref<96xf32, #tpu.memory_space<smem>>
    %7 = vector.broadcast %6 : f32 to vector<1x128xf32>
    %8 = arith.mulf %5, %7 : vector<1x128xf32>
    %9 = arith.addf %4, %8 : vector<1x128xf32>
    %10 = vector.extract_strided_slice %0 {offsets = [2, 0], sizes = [1, 128], strides = [1, 1]} : vector<4x128xf32> to vector<1x128xf32>
    %c8 = arith.constant 8 : index
    %11 = memref.load %arg1[%c8] : memref<96xf32, #tpu.memory_space<smem>>
    %12 = vector.broadcast %11 : f32 to vector<1x128xf32>
    %13 = arith.mulf %10, %12 : vector<1x128xf32>
    %14 = arith.addf %9, %13 : vector<1x128xf32>
    %15 = vector.extract_strided_slice %0 {offsets = [3, 0], sizes = [1, 128], strides = [1, 1]} : vector<4x128xf32> to vector<1x128xf32>
    %c12 = arith.constant 12 : index
    %16 = memref.load %arg1[%c12] : memref<96xf32, #tpu.memory_space<smem>>
    %17 = vector.broadcast %16 : f32 to vector<1x128xf32>
    %18 = arith.mulf %15, %17 : vector<1x128xf32>
    %19 = arith.addf %14, %18 : vector<1x128xf32>
    %c0_2 = arith.constant 0 : index
    %20 = memref.load %arg2[%c0_2] : memref<24xf32, #tpu.memory_space<smem>>
    %21 = vector.broadcast %20 : f32 to vector<1x128xf32>
    %22 = arith.addf %19, %21 : vector<1x128xf32>
    %cst = arith.constant 0.000000e+00 : f32
    %23 = vector.broadcast %cst : f32 to vector<1x128xf32>
    %24 = arith.maximumf %22, %23 : vector<1x128xf32>
    %25 = vector.extract_strided_slice %0 {offsets = [0, 0], sizes = [1, 128], strides = [1, 1]} : vector<4x128xf32> to vector<1x128xf32>
    %c1 = arith.constant 1 : index
    %26 = memref.load %arg1[%c1] : memref<96xf32, #tpu.memory_space<smem>>
    %27 = vector.broadcast %26 : f32 to vector<1x128xf32>
    %28 = arith.mulf %25, %27 : vector<1x128xf32>
    %29 = vector.extract_strided_slice %0 {offsets = [1, 0], sizes = [1, 128], strides = [1, 1]} : vector<4x128xf32> to vector<1x128xf32>
    %c5 = arith.constant 5 : index
    %30 = memref.load %arg1[%c5] : memref<96xf32, #tpu.memory_space<smem>>
    %31 = vector.broadcast %30 : f32 to vector<1x128xf32>
    %32 = arith.mulf %29, %31 : vector<1x128xf32>
    %33 = arith.addf %28, %32 : vector<1x128xf32>
    %34 = vector.extract_strided_slice %0 {offsets = [2, 0], sizes = [1, 128], strides = [1, 1]} : vector<4x128xf32> to vector<1x128xf32>
    %c9 = arith.constant 9 : index
    %35 = memref.load %arg1[%c9] : memref<96xf32, #tpu.memory_space<smem>>
    %36 = vector.broadcast %35 : f32 to vector<1x128xf32>
    %37 = arith.mulf %34, %36 : vector<1x128xf32>
    %38 = arith.addf %33, %37 : vector<1x128xf32>
    %39 = vector.extract_strided_slice %0 {offsets = [3, 0], sizes = [1, 128], strides = [1, 1]} : vector<4x128xf32> to vector<1x128xf32>
    %c13 = arith.constant 13 : index
    %40 = memref.load %arg1[%c13] : memref<96xf32, #tpu.memory_space<smem>>
    %41 = vector.broadcast %40 : f32 to vector<1x128xf32>
    %42 = arith.mulf %39, %41 : vector<1x128xf32>
    %43 = arith.addf %38, %42 : vector<1x128xf32>
    %c1_3 = arith.constant 1 : index
    %44 = memref.load %arg2[%c1_3] : memref<24xf32, #tpu.memory_space<smem>>
    %45 = vector.broadcast %44 : f32 to vector<1x128xf32>
    %46 = arith.addf %43, %45 : vector<1x128xf32>
    %cst_4 = arith.constant 0.000000e+00 : f32
    %47 = vector.broadcast %cst_4 : f32 to vector<1x128xf32>
    %48 = arith.maximumf %46, %47 : vector<1x128xf32>
    %49 = vector.extract_strided_slice %0 {offsets = [0, 0], sizes = [1, 128], strides = [1, 1]} : vector<4x128xf32> to vector<1x128xf32>
    %c2 = arith.constant 2 : index
    %50 = memref.load %arg1[%c2] : memref<96xf32, #tpu.memory_space<smem>>
    %51 = vector.broadcast %50 : f32 to vector<1x128xf32>
    %52 = arith.mulf %49, %51 : vector<1x128xf32>
    %53 = vector.extract_strided_slice %0 {offsets = [1, 0], sizes = [1, 128], strides = [1, 1]} : vector<4x128xf32> to vector<1x128xf32>
    %c6 = arith.constant 6 : index
    %54 = memref.load %arg1[%c6] : memref<96xf32, #tpu.memory_space<smem>>
    %55 = vector.broadcast %54 : f32 to vector<1x128xf32>
    %56 = arith.mulf %53, %55 : vector<1x128xf32>
    %57 = arith.addf %52, %56 : vector<1x128xf32>
    %58 = vector.extract_strided_slice %0 {offsets = [2, 0], sizes = [1, 128], strides = [1, 1]} : vector<4x128xf32> to vector<1x128xf32>
    %c10 = arith.constant 10 : index
    %59 = memref.load %arg1[%c10] : memref<96xf32, #tpu.memory_space<smem>>
    %60 = vector.broadcast %59 : f32 to vector<1x128xf32>
    %61 = arith.mulf %58, %60 : vector<1x128xf32>
    %62 = arith.addf %57, %61 : vector<1x128xf32>
    %63 = vector.extract_strided_slice %0 {offsets = [3, 0], sizes = [1, 128], strides = [1, 1]} : vector<4x128xf32> to vector<1x128xf32>
    %c14 = arith.constant 14 : index
    %64 = memref.load %arg1[%c14] : memref<96xf32, #tpu.memory_space<smem>>
    %65 = vector.broadcast %64 : f32 to vector<1x128xf32>
    %66 = arith.mulf %63, %65 : vector<1x128xf32>
    %67 = arith.addf %62, %66 : vector<1x128xf32>
    %c2_5 = arith.constant 2 : index
    %68 = memref.load %arg2[%c2_5] : memref<24xf32, #tpu.memory_space<smem>>
    %69 = vector.broadcast %68 : f32 to vector<1x128xf32>
    %70 = arith.addf %67, %69 : vector<1x128xf32>
    %cst_6 = arith.constant 0.000000e+00 : f32
    %71 = vector.broadcast %cst_6 : f32 to vector<1x128xf32>
    %72 = arith.maximumf %70, %71 : vector<1x128xf32>
    %73 = vector.extract_strided_slice %0 {offsets = [0, 0], sizes = [1, 128], strides = [1, 1]} : vector<4x128xf32> to vector<1x128xf32>
    %c3 = arith.constant 3 : index
    %74 = memref.load %arg1[%c3] : memref<96xf32, #tpu.memory_space<smem>>
    %75 = vector.broadcast %74 : f32 to vector<1x128xf32>
    %76 = arith.mulf %73, %75 : vector<1x128xf32>
    %77 = vector.extract_strided_slice %0 {offsets = [1, 0], sizes = [1, 128], strides = [1, 1]} : vector<4x128xf32> to vector<1x128xf32>
    %c7 = arith.constant 7 : index
    %78 = memref.load %arg1[%c7] : memref<96xf32, #tpu.memory_space<smem>>
    %79 = vector.broadcast %78 : f32 to vector<1x128xf32>
    %80 = arith.mulf %77, %79 : vector<1x128xf32>
    %81 = arith.addf %76, %80 : vector<1x128xf32>
    %82 = vector.extract_strided_slice %0 {offsets = [2, 0], sizes = [1, 128], strides = [1, 1]} : vector<4x128xf32> to vector<1x128xf32>
    %c11 = arith.constant 11 : index
    %83 = memref.load %arg1[%c11] : memref<96xf32, #tpu.memory_space<smem>>
    %84 = vector.broadcast %83 : f32 to vector<1x128xf32>
    %85 = arith.mulf %82, %84 : vector<1x128xf32>
    %86 = arith.addf %81, %85 : vector<1x128xf32>
    %87 = vector.extract_strided_slice %0 {offsets = [3, 0], sizes = [1, 128], strides = [1, 1]} : vector<4x128xf32> to vector<1x128xf32>
    %c15 = arith.constant 15 : index
    %88 = memref.load %arg1[%c15] : memref<96xf32, #tpu.memory_space<smem>>
    %89 = vector.broadcast %88 : f32 to vector<1x128xf32>
    %90 = arith.mulf %87, %89 : vector<1x128xf32>
    %91 = arith.addf %86, %90 : vector<1x128xf32>
    %c3_7 = arith.constant 3 : index
    %92 = memref.load %arg2[%c3_7] : memref<24xf32, #tpu.memory_space<smem>>
    %93 = vector.broadcast %92 : f32 to vector<1x128xf32>
    %94 = arith.addf %91, %93 : vector<1x128xf32>
    %cst_8 = arith.constant 0.000000e+00 : f32
    %95 = vector.broadcast %cst_8 : f32 to vector<1x128xf32>
    %96 = arith.maximumf %94, %95 : vector<1x128xf32>
    %97 = tpu.concatenate %24, %48, %72, %96 in 0 : vector<1x128xf32>, vector<1x128xf32>, vector<1x128xf32>, vector<1x128xf32> -> vector<4x128xf32>
    %98 = vector.extract_strided_slice %97 {offsets = [0, 0], sizes = [1, 128], strides = [1, 1]} : vector<4x128xf32> to vector<1x128xf32>
    %c16 = arith.constant 16 : index
    %99 = memref.load %arg1[%c16] : memref<96xf32, #tpu.memory_space<smem>>
    %100 = vector.broadcast %99 : f32 to vector<1x128xf32>
    %101 = arith.mulf %98, %100 : vector<1x128xf32>
    %102 = vector.extract_strided_slice %97 {offsets = [1, 0], sizes = [1, 128], strides = [1, 1]} : vector<4x128xf32> to vector<1x128xf32>
    %c20 = arith.constant 20 : index
    %103 = memref.load %arg1[%c20] : memref<96xf32, #tpu.memory_space<smem>>
    %104 = vector.broadcast %103 : f32 to vector<1x128xf32>
    %105 = arith.mulf %102, %104 : vector<1x128xf32>
    %106 = arith.addf %101, %105 : vector<1x128xf32>
    %107 = vector.extract_strided_slice %97 {offsets = [2, 0], sizes = [1, 128], strides = [1, 1]} : vector<4x128xf32> to vector<1x128xf32>
    %c24 = arith.constant 24 : index
    %108 = memref.load %arg1[%c24] : memref<96xf32, #tpu.memory_space<smem>>
    %109 = vector.broadcast %108 : f32 to vector<1x128xf32>
    %110 = arith.mulf %107, %109 : vector<1x128xf32>
    %111 = arith.addf %106, %110 : vector<1x128xf32>
    %112 = vector.extract_strided_slice %97 {offsets = [3, 0], sizes = [1, 128], strides = [1, 1]} : vector<4x128xf32> to vector<1x128xf32>
    %c28 = arith.constant 28 : index
    %113 = memref.load %arg1[%c28] : memref<96xf32, #tpu.memory_space<smem>>
    %114 = vector.broadcast %113 : f32 to vector<1x128xf32>
    %115 = arith.mulf %112, %114 : vector<1x128xf32>
    %116 = arith.addf %111, %115 : vector<1x128xf32>
    %c4_9 = arith.constant 4 : index
    %117 = memref.load %arg2[%c4_9] : memref<24xf32, #tpu.memory_space<smem>>
    %118 = vector.broadcast %117 : f32 to vector<1x128xf32>
    %119 = arith.addf %116, %118 : vector<1x128xf32>
    %cst_10 = arith.constant 0.000000e+00 : f32
    %120 = vector.broadcast %cst_10 : f32 to vector<1x128xf32>
    %121 = arith.maximumf %119, %120 : vector<1x128xf32>
    %122 = vector.extract_strided_slice %97 {offsets = [0, 0], sizes = [1, 128], strides = [1, 1]} : vector<4x128xf32> to vector<1x128xf32>
    %c17 = arith.constant 17 : index
    %123 = memref.load %arg1[%c17] : memref<96xf32, #tpu.memory_space<smem>>
    %124 = vector.broadcast %123 : f32 to vector<1x128xf32>
    %125 = arith.mulf %122, %124 : vector<1x128xf32>
    %126 = vector.extract_strided_slice %97 {offsets = [1, 0], sizes = [1, 128], strides = [1, 1]} : vector<4x128xf32> to vector<1x128xf32>
    %c21 = arith.constant 21 : index
    %127 = memref.load %arg1[%c21] : memref<96xf32, #tpu.memory_space<smem>>
    %128 = vector.broadcast %127 : f32 to vector<1x128xf32>
    %129 = arith.mulf %126, %128 : vector<1x128xf32>
    %130 = arith.addf %125, %129 : vector<1x128xf32>
    %131 = vector.extract_strided_slice %97 {offsets = [2, 0], sizes = [1, 128], strides = [1, 1]} : vector<4x128xf32> to vector<1x128xf32>
    %c25 = arith.constant 25 : index
    %132 = memref.load %arg1[%c25] : memref<96xf32, #tpu.memory_space<smem>>
    %133 = vector.broadcast %132 : f32 to vector<1x128xf32>
    %134 = arith.mulf %131, %133 : vector<1x128xf32>
    %135 = arith.addf %130, %134 : vector<1x128xf32>
    %136 = vector.extract_strided_slice %97 {offsets = [3, 0], sizes = [1, 128], strides = [1, 1]} : vector<4x128xf32> to vector<1x128xf32>
    %c29 = arith.constant 29 : index
    %137 = memref.load %arg1[%c29] : memref<96xf32, #tpu.memory_space<smem>>
    %138 = vector.broadcast %137 : f32 to vector<1x128xf32>
    %139 = arith.mulf %136, %138 : vector<1x128xf32>
    %140 = arith.addf %135, %139 : vector<1x128xf32>
    %c5_11 = arith.constant 5 : index
    %141 = memref.load %arg2[%c5_11] : memref<24xf32, #tpu.memory_space<smem>>
    %142 = vector.broadcast %141 : f32 to vector<1x128xf32>
    %143 = arith.addf %140, %142 : vector<1x128xf32>
    %cst_12 = arith.constant 0.000000e+00 : f32
    %144 = vector.broadcast %cst_12 : f32 to vector<1x128xf32>
    %145 = arith.maximumf %143, %144 : vector<1x128xf32>
    %146 = vector.extract_strided_slice %97 {offsets = [0, 0], sizes = [1, 128], strides = [1, 1]} : vector<4x128xf32> to vector<1x128xf32>
    %c18 = arith.constant 18 : index
    %147 = memref.load %arg1[%c18] : memref<96xf32, #tpu.memory_space<smem>>
    %148 = vector.broadcast %147 : f32 to vector<1x128xf32>
    %149 = arith.mulf %146, %148 : vector<1x128xf32>
    %150 = vector.extract_strided_slice %97 {offsets = [1, 0], sizes = [1, 128], strides = [1, 1]} : vector<4x128xf32> to vector<1x128xf32>
    %c22 = arith.constant 22 : index
    %151 = memref.load %arg1[%c22] : memref<96xf32, #tpu.memory_space<smem>>
    %152 = vector.broadcast %151 : f32 to vector<1x128xf32>
    %153 = arith.mulf %150, %152 : vector<1x128xf32>
    %154 = arith.addf %149, %153 : vector<1x128xf32>
    %155 = vector.extract_strided_slice %97 {offsets = [2, 0], sizes = [1, 128], strides = [1, 1]} : vector<4x128xf32> to vector<1x128xf32>
    %c26 = arith.constant 26 : index
    %156 = memref.load %arg1[%c26] : memref<96xf32, #tpu.memory_space<smem>>
    %157 = vector.broadcast %156 : f32 to vector<1x128xf32>
    %158 = arith.mulf %155, %157 : vector<1x128xf32>
    %159 = arith.addf %154, %158 : vector<1x128xf32>
    %160 = vector.extract_strided_slice %97 {offsets = [3, 0], sizes = [1, 128], strides = [1, 1]} : vector<4x128xf32> to vector<1x128xf32>
    %c30 = arith.constant 30 : index
    %161 = memref.load %arg1[%c30] : memref<96xf32, #tpu.memory_space<smem>>
    %162 = vector.broadcast %161 : f32 to vector<1x128xf32>
    %163 = arith.mulf %160, %162 : vector<1x128xf32>
    %164 = arith.addf %159, %163 : vector<1x128xf32>
    %c6_13 = arith.constant 6 : index
    %165 = memref.load %arg2[%c6_13] : memref<24xf32, #tpu.memory_space<smem>>
    %166 = vector.broadcast %165 : f32 to vector<1x128xf32>
    %167 = arith.addf %164, %166 : vector<1x128xf32>
    %cst_14 = arith.constant 0.000000e+00 : f32
    %168 = vector.broadcast %cst_14 : f32 to vector<1x128xf32>
    %169 = arith.maximumf %167, %168 : vector<1x128xf32>
    %170 = vector.extract_strided_slice %97 {offsets = [0, 0], sizes = [1, 128], strides = [1, 1]} : vector<4x128xf32> to vector<1x128xf32>
    %c19 = arith.constant 19 : index
    %171 = memref.load %arg1[%c19] : memref<96xf32, #tpu.memory_space<smem>>
    %172 = vector.broadcast %171 : f32 to vector<1x128xf32>
    %173 = arith.mulf %170, %172 : vector<1x128xf32>
    %174 = vector.extract_strided_slice %97 {offsets = [1, 0], sizes = [1, 128], strides = [1, 1]} : vector<4x128xf32> to vector<1x128xf32>
    %c23 = arith.constant 23 : index
    %175 = memref.load %arg1[%c23] : memref<96xf32, #tpu.memory_space<smem>>
    %176 = vector.broadcast %175 : f32 to vector<1x128xf32>
    %177 = arith.mulf %174, %176 : vector<1x128xf32>
    %178 = arith.addf %173, %177 : vector<1x128xf32>
    %179 = vector.extract_strided_slice %97 {offsets = [2, 0], sizes = [1, 128], strides = [1, 1]} : vector<4x128xf32> to vector<1x128xf32>
    %c27 = arith.constant 27 : index
    %180 = memref.load %arg1[%c27] : memref<96xf32, #tpu.memory_space<smem>>
    %181 = vector.broadcast %180 : f32 to vector<1x128xf32>
    %182 = arith.mulf %179, %181 : vector<1x128xf32>
    %183 = arith.addf %178, %182 : vector<1x128xf32>
    %184 = vector.extract_strided_slice %97 {offsets = [3, 0], sizes = [1, 128], strides = [1, 1]} : vector<4x128xf32> to vector<1x128xf32>
    %c31 = arith.constant 31 : index
    %185 = memref.load %arg1[%c31] : memref<96xf32, #tpu.memory_space<smem>>
    %186 = vector.broadcast %185 : f32 to vector<1x128xf32>
    %187 = arith.mulf %184, %186 : vector<1x128xf32>
    %188 = arith.addf %183, %187 : vector<1x128xf32>
    %c7_15 = arith.constant 7 : index
    %189 = memref.load %arg2[%c7_15] : memref<24xf32, #tpu.memory_space<smem>>
    %190 = vector.broadcast %189 : f32 to vector<1x128xf32>
    %191 = arith.addf %188, %190 : vector<1x128xf32>
    %cst_16 = arith.constant 0.000000e+00 : f32
    %192 = vector.broadcast %cst_16 : f32 to vector<1x128xf32>
    %193 = arith.maximumf %191, %192 : vector<1x128xf32>
    %194 = tpu.concatenate %121, %145, %169, %193 in 0 : vector<1x128xf32>, vector<1x128xf32>, vector<1x128xf32>, vector<1x128xf32> -> vector<4x128xf32>
    %195 = vector.extract_strided_slice %194 {offsets = [0, 0], sizes = [1, 128], strides = [1, 1]} : vector<4x128xf32> to vector<1x128xf32>
    %c32 = arith.constant 32 : index
    %196 = memref.load %arg1[%c32] : memref<96xf32, #tpu.memory_space<smem>>
    %197 = vector.broadcast %196 : f32 to vector<1x128xf32>
    %198 = arith.mulf %195, %197 : vector<1x128xf32>
    %199 = vector.extract_strided_slice %194 {offsets = [1, 0], sizes = [1, 128], strides = [1, 1]} : vector<4x128xf32> to vector<1x128xf32>
    %c36 = arith.constant 36 : index
    %200 = memref.load %arg1[%c36] : memref<96xf32, #tpu.memory_space<smem>>
    %201 = vector.broadcast %200 : f32 to vector<1x128xf32>
    %202 = arith.mulf %199, %201 : vector<1x128xf32>
    %203 = arith.addf %198, %202 : vector<1x128xf32>
    %204 = vector.extract_strided_slice %194 {offsets = [2, 0], sizes = [1, 128], strides = [1, 1]} : vector<4x128xf32> to vector<1x128xf32>
    %c40 = arith.constant 40 : index
    %205 = memref.load %arg1[%c40] : memref<96xf32, #tpu.memory_space<smem>>
    %206 = vector.broadcast %205 : f32 to vector<1x128xf32>
    %207 = arith.mulf %204, %206 : vector<1x128xf32>
    %208 = arith.addf %203, %207 : vector<1x128xf32>
    %209 = vector.extract_strided_slice %194 {offsets = [3, 0], sizes = [1, 128], strides = [1, 1]} : vector<4x128xf32> to vector<1x128xf32>
    %c44 = arith.constant 44 : index
    %210 = memref.load %arg1[%c44] : memref<96xf32, #tpu.memory_space<smem>>
    %211 = vector.broadcast %210 : f32 to vector<1x128xf32>
    %212 = arith.mulf %209, %211 : vector<1x128xf32>
    %213 = arith.addf %208, %212 : vector<1x128xf32>
    %c8_17 = arith.constant 8 : index
    %214 = memref.load %arg2[%c8_17] : memref<24xf32, #tpu.memory_space<smem>>
    %215 = vector.broadcast %214 : f32 to vector<1x128xf32>
    %216 = arith.addf %213, %215 : vector<1x128xf32>
    %cst_18 = arith.constant 0.000000e+00 : f32
    %217 = vector.broadcast %cst_18 : f32 to vector<1x128xf32>
    %218 = arith.maximumf %216, %217 : vector<1x128xf32>
    %219 = vector.extract_strided_slice %194 {offsets = [0, 0], sizes = [1, 128], strides = [1, 1]} : vector<4x128xf32> to vector<1x128xf32>
    %c33 = arith.constant 33 : index
    %220 = memref.load %arg1[%c33] : memref<96xf32, #tpu.memory_space<smem>>
    %221 = vector.broadcast %220 : f32 to vector<1x128xf32>
    %222 = arith.mulf %219, %221 : vector<1x128xf32>
    %223 = vector.extract_strided_slice %194 {offsets = [1, 0], sizes = [1, 128], strides = [1, 1]} : vector<4x128xf32> to vector<1x128xf32>
    %c37 = arith.constant 37 : index
    %224 = memref.load %arg1[%c37] : memref<96xf32, #tpu.memory_space<smem>>
    %225 = vector.broadcast %224 : f32 to vector<1x128xf32>
    %226 = arith.mulf %223, %225 : vector<1x128xf32>
    %227 = arith.addf %222, %226 : vector<1x128xf32>
    %228 = vector.extract_strided_slice %194 {offsets = [2, 0], sizes = [1, 128], strides = [1, 1]} : vector<4x128xf32> to vector<1x128xf32>
    %c41 = arith.constant 41 : index
    %229 = memref.load %arg1[%c41] : memref<96xf32, #tpu.memory_space<smem>>
    %230 = vector.broadcast %229 : f32 to vector<1x128xf32>
    %231 = arith.mulf %228, %230 : vector<1x128xf32>
    %232 = arith.addf %227, %231 : vector<1x128xf32>
    %233 = vector.extract_strided_slice %194 {offsets = [3, 0], sizes = [1, 128], strides = [1, 1]} : vector<4x128xf32> to vector<1x128xf32>
    %c45 = arith.constant 45 : index
    %234 = memref.load %arg1[%c45] : memref<96xf32, #tpu.memory_space<smem>>
    %235 = vector.broadcast %234 : f32 to vector<1x128xf32>
    %236 = arith.mulf %233, %235 : vector<1x128xf32>
    %237 = arith.addf %232, %236 : vector<1x128xf32>
    %c9_19 = arith.constant 9 : index
    %238 = memref.load %arg2[%c9_19] : memref<24xf32, #tpu.memory_space<smem>>
    %239 = vector.broadcast %238 : f32 to vector<1x128xf32>
    %240 = arith.addf %237, %239 : vector<1x128xf32>
    %cst_20 = arith.constant 0.000000e+00 : f32
    %241 = vector.broadcast %cst_20 : f32 to vector<1x128xf32>
    %242 = arith.maximumf %240, %241 : vector<1x128xf32>
    %243 = vector.extract_strided_slice %194 {offsets = [0, 0], sizes = [1, 128], strides = [1, 1]} : vector<4x128xf32> to vector<1x128xf32>
    %c34 = arith.constant 34 : index
    %244 = memref.load %arg1[%c34] : memref<96xf32, #tpu.memory_space<smem>>
    %245 = vector.broadcast %244 : f32 to vector<1x128xf32>
    %246 = arith.mulf %243, %245 : vector<1x128xf32>
    %247 = vector.extract_strided_slice %194 {offsets = [1, 0], sizes = [1, 128], strides = [1, 1]} : vector<4x128xf32> to vector<1x128xf32>
    %c38 = arith.constant 38 : index
    %248 = memref.load %arg1[%c38] : memref<96xf32, #tpu.memory_space<smem>>
    %249 = vector.broadcast %248 : f32 to vector<1x128xf32>
    %250 = arith.mulf %247, %249 : vector<1x128xf32>
    %251 = arith.addf %246, %250 : vector<1x128xf32>
    %252 = vector.extract_strided_slice %194 {offsets = [2, 0], sizes = [1, 128], strides = [1, 1]} : vector<4x128xf32> to vector<1x128xf32>
    %c42 = arith.constant 42 : index
    %253 = memref.load %arg1[%c42] : memref<96xf32, #tpu.memory_space<smem>>
    %254 = vector.broadcast %253 : f32 to vector<1x128xf32>
    %255 = arith.mulf %252, %254 : vector<1x128xf32>
    %256 = arith.addf %251, %255 : vector<1x128xf32>
    %257 = vector.extract_strided_slice %194 {offsets = [3, 0], sizes = [1, 128], strides = [1, 1]} : vector<4x128xf32> to vector<1x128xf32>
    %c46 = arith.constant 46 : index
    %258 = memref.load %arg1[%c46] : memref<96xf32, #tpu.memory_space<smem>>
    %259 = vector.broadcast %258 : f32 to vector<1x128xf32>
    %260 = arith.mulf %257, %259 : vector<1x128xf32>
    %261 = arith.addf %256, %260 : vector<1x128xf32>
    %c10_21 = arith.constant 10 : index
    %262 = memref.load %arg2[%c10_21] : memref<24xf32, #tpu.memory_space<smem>>
    %263 = vector.broadcast %262 : f32 to vector<1x128xf32>
    %264 = arith.addf %261, %263 : vector<1x128xf32>
    %cst_22 = arith.constant 0.000000e+00 : f32
    %265 = vector.broadcast %cst_22 : f32 to vector<1x128xf32>
    %266 = arith.maximumf %264, %265 : vector<1x128xf32>
    %267 = vector.extract_strided_slice %194 {offsets = [0, 0], sizes = [1, 128], strides = [1, 1]} : vector<4x128xf32> to vector<1x128xf32>
    %c35 = arith.constant 35 : index
    %268 = memref.load %arg1[%c35] : memref<96xf32, #tpu.memory_space<smem>>
    %269 = vector.broadcast %268 : f32 to vector<1x128xf32>
    %270 = arith.mulf %267, %269 : vector<1x128xf32>
    %271 = vector.extract_strided_slice %194 {offsets = [1, 0], sizes = [1, 128], strides = [1, 1]} : vector<4x128xf32> to vector<1x128xf32>
    %c39 = arith.constant 39 : index
    %272 = memref.load %arg1[%c39] : memref<96xf32, #tpu.memory_space<smem>>
    %273 = vector.broadcast %272 : f32 to vector<1x128xf32>
    %274 = arith.mulf %271, %273 : vector<1x128xf32>
    %275 = arith.addf %270, %274 : vector<1x128xf32>
    %276 = vector.extract_strided_slice %194 {offsets = [2, 0], sizes = [1, 128], strides = [1, 1]} : vector<4x128xf32> to vector<1x128xf32>
    %c43 = arith.constant 43 : index
    %277 = memref.load %arg1[%c43] : memref<96xf32, #tpu.memory_space<smem>>
    %278 = vector.broadcast %277 : f32 to vector<1x128xf32>
    %279 = arith.mulf %276, %278 : vector<1x128xf32>
    %280 = arith.addf %275, %279 : vector<1x128xf32>
    %281 = vector.extract_strided_slice %194 {offsets = [3, 0], sizes = [1, 128], strides = [1, 1]} : vector<4x128xf32> to vector<1x128xf32>
    %c47 = arith.constant 47 : index
    %282 = memref.load %arg1[%c47] : memref<96xf32, #tpu.memory_space<smem>>
    %283 = vector.broadcast %282 : f32 to vector<1x128xf32>
    %284 = arith.mulf %281, %283 : vector<1x128xf32>
    %285 = arith.addf %280, %284 : vector<1x128xf32>
    %c11_23 = arith.constant 11 : index
    %286 = memref.load %arg2[%c11_23] : memref<24xf32, #tpu.memory_space<smem>>
    %287 = vector.broadcast %286 : f32 to vector<1x128xf32>
    %288 = arith.addf %285, %287 : vector<1x128xf32>
    %cst_24 = arith.constant 0.000000e+00 : f32
    %289 = vector.broadcast %cst_24 : f32 to vector<1x128xf32>
    %290 = arith.maximumf %288, %289 : vector<1x128xf32>
    %291 = tpu.concatenate %218, %242, %266, %290 in 0 : vector<1x128xf32>, vector<1x128xf32>, vector<1x128xf32>, vector<1x128xf32> -> vector<4x128xf32>
    %292 = vector.extract_strided_slice %291 {offsets = [0, 0], sizes = [1, 128], strides = [1, 1]} : vector<4x128xf32> to vector<1x128xf32>
    %c48 = arith.constant 48 : index
    %293 = memref.load %arg1[%c48] : memref<96xf32, #tpu.memory_space<smem>>
    %294 = vector.broadcast %293 : f32 to vector<1x128xf32>
    %295 = arith.mulf %292, %294 : vector<1x128xf32>
    %296 = vector.extract_strided_slice %291 {offsets = [1, 0], sizes = [1, 128], strides = [1, 1]} : vector<4x128xf32> to vector<1x128xf32>
    %c52 = arith.constant 52 : index
    %297 = memref.load %arg1[%c52] : memref<96xf32, #tpu.memory_space<smem>>
    %298 = vector.broadcast %297 : f32 to vector<1x128xf32>
    %299 = arith.mulf %296, %298 : vector<1x128xf32>
    %300 = arith.addf %295, %299 : vector<1x128xf32>
    %301 = vector.extract_strided_slice %291 {offsets = [2, 0], sizes = [1, 128], strides = [1, 1]} : vector<4x128xf32> to vector<1x128xf32>
    %c56 = arith.constant 56 : index
    %302 = memref.load %arg1[%c56] : memref<96xf32, #tpu.memory_space<smem>>
    %303 = vector.broadcast %302 : f32 to vector<1x128xf32>
    %304 = arith.mulf %301, %303 : vector<1x128xf32>
    %305 = arith.addf %300, %304 : vector<1x128xf32>
    %306 = vector.extract_strided_slice %291 {offsets = [3, 0], sizes = [1, 128], strides = [1, 1]} : vector<4x128xf32> to vector<1x128xf32>
    %c60 = arith.constant 60 : index
    %307 = memref.load %arg1[%c60] : memref<96xf32, #tpu.memory_space<smem>>
    %308 = vector.broadcast %307 : f32 to vector<1x128xf32>
    %309 = arith.mulf %306, %308 : vector<1x128xf32>
    %310 = arith.addf %305, %309 : vector<1x128xf32>
    %c12_25 = arith.constant 12 : index
    %311 = memref.load %arg2[%c12_25] : memref<24xf32, #tpu.memory_space<smem>>
    %312 = vector.broadcast %311 : f32 to vector<1x128xf32>
    %313 = arith.addf %310, %312 : vector<1x128xf32>
    %cst_26 = arith.constant 0.000000e+00 : f32
    %314 = vector.broadcast %cst_26 : f32 to vector<1x128xf32>
    %315 = arith.maximumf %313, %314 : vector<1x128xf32>
    %316 = vector.extract_strided_slice %291 {offsets = [0, 0], sizes = [1, 128], strides = [1, 1]} : vector<4x128xf32> to vector<1x128xf32>
    %c49 = arith.constant 49 : index
    %317 = memref.load %arg1[%c49] : memref<96xf32, #tpu.memory_space<smem>>
    %318 = vector.broadcast %317 : f32 to vector<1x128xf32>
    %319 = arith.mulf %316, %318 : vector<1x128xf32>
    %320 = vector.extract_strided_slice %291 {offsets = [1, 0], sizes = [1, 128], strides = [1, 1]} : vector<4x128xf32> to vector<1x128xf32>
    %c53 = arith.constant 53 : index
    %321 = memref.load %arg1[%c53] : memref<96xf32, #tpu.memory_space<smem>>
    %322 = vector.broadcast %321 : f32 to vector<1x128xf32>
    %323 = arith.mulf %320, %322 : vector<1x128xf32>
    %324 = arith.addf %319, %323 : vector<1x128xf32>
    %325 = vector.extract_strided_slice %291 {offsets = [2, 0], sizes = [1, 128], strides = [1, 1]} : vector<4x128xf32> to vector<1x128xf32>
    %c57 = arith.constant 57 : index
    %326 = memref.load %arg1[%c57] : memref<96xf32, #tpu.memory_space<smem>>
    %327 = vector.broadcast %326 : f32 to vector<1x128xf32>
    %328 = arith.mulf %325, %327 : vector<1x128xf32>
    %329 = arith.addf %324, %328 : vector<1x128xf32>
    %330 = vector.extract_strided_slice %291 {offsets = [3, 0], sizes = [1, 128], strides = [1, 1]} : vector<4x128xf32> to vector<1x128xf32>
    %c61 = arith.constant 61 : index
    %331 = memref.load %arg1[%c61] : memref<96xf32, #tpu.memory_space<smem>>
    %332 = vector.broadcast %331 : f32 to vector<1x128xf32>
    %333 = arith.mulf %330, %332 : vector<1x128xf32>
    %334 = arith.addf %329, %333 : vector<1x128xf32>
    %c13_27 = arith.constant 13 : index
    %335 = memref.load %arg2[%c13_27] : memref<24xf32, #tpu.memory_space<smem>>
    %336 = vector.broadcast %335 : f32 to vector<1x128xf32>
    %337 = arith.addf %334, %336 : vector<1x128xf32>
    %cst_28 = arith.constant 0.000000e+00 : f32
    %338 = vector.broadcast %cst_28 : f32 to vector<1x128xf32>
    %339 = arith.maximumf %337, %338 : vector<1x128xf32>
    %340 = vector.extract_strided_slice %291 {offsets = [0, 0], sizes = [1, 128], strides = [1, 1]} : vector<4x128xf32> to vector<1x128xf32>
    %c50 = arith.constant 50 : index
    %341 = memref.load %arg1[%c50] : memref<96xf32, #tpu.memory_space<smem>>
    %342 = vector.broadcast %341 : f32 to vector<1x128xf32>
    %343 = arith.mulf %340, %342 : vector<1x128xf32>
    %344 = vector.extract_strided_slice %291 {offsets = [1, 0], sizes = [1, 128], strides = [1, 1]} : vector<4x128xf32> to vector<1x128xf32>
    %c54 = arith.constant 54 : index
    %345 = memref.load %arg1[%c54] : memref<96xf32, #tpu.memory_space<smem>>
    %346 = vector.broadcast %345 : f32 to vector<1x128xf32>
    %347 = arith.mulf %344, %346 : vector<1x128xf32>
    %348 = arith.addf %343, %347 : vector<1x128xf32>
    %349 = vector.extract_strided_slice %291 {offsets = [2, 0], sizes = [1, 128], strides = [1, 1]} : vector<4x128xf32> to vector<1x128xf32>
    %c58 = arith.constant 58 : index
    %350 = memref.load %arg1[%c58] : memref<96xf32, #tpu.memory_space<smem>>
    %351 = vector.broadcast %350 : f32 to vector<1x128xf32>
    %352 = arith.mulf %349, %351 : vector<1x128xf32>
    %353 = arith.addf %348, %352 : vector<1x128xf32>
    %354 = vector.extract_strided_slice %291 {offsets = [3, 0], sizes = [1, 128], strides = [1, 1]} : vector<4x128xf32> to vector<1x128xf32>
    %c62 = arith.constant 62 : index
    %355 = memref.load %arg1[%c62] : memref<96xf32, #tpu.memory_space<smem>>
    %356 = vector.broadcast %355 : f32 to vector<1x128xf32>
    %357 = arith.mulf %354, %356 : vector<1x128xf32>
    %358 = arith.addf %353, %357 : vector<1x128xf32>
    %c14_29 = arith.constant 14 : index
    %359 = memref.load %arg2[%c14_29] : memref<24xf32, #tpu.memory_space<smem>>
    %360 = vector.broadcast %359 : f32 to vector<1x128xf32>
    %361 = arith.addf %358, %360 : vector<1x128xf32>
    %cst_30 = arith.constant 0.000000e+00 : f32
    %362 = vector.broadcast %cst_30 : f32 to vector<1x128xf32>
    %363 = arith.maximumf %361, %362 : vector<1x128xf32>
    %364 = vector.extract_strided_slice %291 {offsets = [0, 0], sizes = [1, 128], strides = [1, 1]} : vector<4x128xf32> to vector<1x128xf32>
    %c51 = arith.constant 51 : index
    %365 = memref.load %arg1[%c51] : memref<96xf32, #tpu.memory_space<smem>>
    %366 = vector.broadcast %365 : f32 to vector<1x128xf32>
    %367 = arith.mulf %364, %366 : vector<1x128xf32>
    %368 = vector.extract_strided_slice %291 {offsets = [1, 0], sizes = [1, 128], strides = [1, 1]} : vector<4x128xf32> to vector<1x128xf32>
    %c55 = arith.constant 55 : index
    %369 = memref.load %arg1[%c55] : memref<96xf32, #tpu.memory_space<smem>>
    %370 = vector.broadcast %369 : f32 to vector<1x128xf32>
    %371 = arith.mulf %368, %370 : vector<1x128xf32>
    %372 = arith.addf %367, %371 : vector<1x128xf32>
    %373 = vector.extract_strided_slice %291 {offsets = [2, 0], sizes = [1, 128], strides = [1, 1]} : vector<4x128xf32> to vector<1x128xf32>
    %c59 = arith.constant 59 : index
    %374 = memref.load %arg1[%c59] : memref<96xf32, #tpu.memory_space<smem>>
    %375 = vector.broadcast %374 : f32 to vector<1x128xf32>
    %376 = arith.mulf %373, %375 : vector<1x128xf32>
    %377 = arith.addf %372, %376 : vector<1x128xf32>
    %378 = vector.extract_strided_slice %291 {offsets = [3, 0], sizes = [1, 128], strides = [1, 1]} : vector<4x128xf32> to vector<1x128xf32>
    %c63 = arith.constant 63 : index
    %379 = memref.load %arg1[%c63] : memref<96xf32, #tpu.memory_space<smem>>
    %380 = vector.broadcast %379 : f32 to vector<1x128xf32>
    %381 = arith.mulf %378, %380 : vector<1x128xf32>
    %382 = arith.addf %377, %381 : vector<1x128xf32>
    %c15_31 = arith.constant 15 : index
    %383 = memref.load %arg2[%c15_31] : memref<24xf32, #tpu.memory_space<smem>>
    %384 = vector.broadcast %383 : f32 to vector<1x128xf32>
    %385 = arith.addf %382, %384 : vector<1x128xf32>
    %cst_32 = arith.constant 0.000000e+00 : f32
    %386 = vector.broadcast %cst_32 : f32 to vector<1x128xf32>
    %387 = arith.maximumf %385, %386 : vector<1x128xf32>
    %388 = tpu.concatenate %315, %339, %363, %387 in 0 : vector<1x128xf32>, vector<1x128xf32>, vector<1x128xf32>, vector<1x128xf32> -> vector<4x128xf32>
    %389 = vector.extract_strided_slice %388 {offsets = [0, 0], sizes = [1, 128], strides = [1, 1]} : vector<4x128xf32> to vector<1x128xf32>
    %c64 = arith.constant 64 : index
    %390 = memref.load %arg1[%c64] : memref<96xf32, #tpu.memory_space<smem>>
    %391 = vector.broadcast %390 : f32 to vector<1x128xf32>
    %392 = arith.mulf %389, %391 : vector<1x128xf32>
    %393 = vector.extract_strided_slice %388 {offsets = [1, 0], sizes = [1, 128], strides = [1, 1]} : vector<4x128xf32> to vector<1x128xf32>
    %c68 = arith.constant 68 : index
    %394 = memref.load %arg1[%c68] : memref<96xf32, #tpu.memory_space<smem>>
    %395 = vector.broadcast %394 : f32 to vector<1x128xf32>
    %396 = arith.mulf %393, %395 : vector<1x128xf32>
    %397 = arith.addf %392, %396 : vector<1x128xf32>
    %398 = vector.extract_strided_slice %388 {offsets = [2, 0], sizes = [1, 128], strides = [1, 1]} : vector<4x128xf32> to vector<1x128xf32>
    %c72 = arith.constant 72 : index
    %399 = memref.load %arg1[%c72] : memref<96xf32, #tpu.memory_space<smem>>
    %400 = vector.broadcast %399 : f32 to vector<1x128xf32>
    %401 = arith.mulf %398, %400 : vector<1x128xf32>
    %402 = arith.addf %397, %401 : vector<1x128xf32>
    %403 = vector.extract_strided_slice %388 {offsets = [3, 0], sizes = [1, 128], strides = [1, 1]} : vector<4x128xf32> to vector<1x128xf32>
    %c76 = arith.constant 76 : index
    %404 = memref.load %arg1[%c76] : memref<96xf32, #tpu.memory_space<smem>>
    %405 = vector.broadcast %404 : f32 to vector<1x128xf32>
    %406 = arith.mulf %403, %405 : vector<1x128xf32>
    %407 = arith.addf %402, %406 : vector<1x128xf32>
    %c16_33 = arith.constant 16 : index
    %408 = memref.load %arg2[%c16_33] : memref<24xf32, #tpu.memory_space<smem>>
    %409 = vector.broadcast %408 : f32 to vector<1x128xf32>
    %410 = arith.addf %407, %409 : vector<1x128xf32>
    %cst_34 = arith.constant 0.000000e+00 : f32
    %411 = vector.broadcast %cst_34 : f32 to vector<1x128xf32>
    %412 = arith.maximumf %410, %411 : vector<1x128xf32>
    %413 = vector.extract_strided_slice %388 {offsets = [0, 0], sizes = [1, 128], strides = [1, 1]} : vector<4x128xf32> to vector<1x128xf32>
    %c65 = arith.constant 65 : index
    %414 = memref.load %arg1[%c65] : memref<96xf32, #tpu.memory_space<smem>>
    %415 = vector.broadcast %414 : f32 to vector<1x128xf32>
    %416 = arith.mulf %413, %415 : vector<1x128xf32>
    %417 = vector.extract_strided_slice %388 {offsets = [1, 0], sizes = [1, 128], strides = [1, 1]} : vector<4x128xf32> to vector<1x128xf32>
    %c69 = arith.constant 69 : index
    %418 = memref.load %arg1[%c69] : memref<96xf32, #tpu.memory_space<smem>>
    %419 = vector.broadcast %418 : f32 to vector<1x128xf32>
    %420 = arith.mulf %417, %419 : vector<1x128xf32>
    %421 = arith.addf %416, %420 : vector<1x128xf32>
    %422 = vector.extract_strided_slice %388 {offsets = [2, 0], sizes = [1, 128], strides = [1, 1]} : vector<4x128xf32> to vector<1x128xf32>
    %c73 = arith.constant 73 : index
    %423 = memref.load %arg1[%c73] : memref<96xf32, #tpu.memory_space<smem>>
    %424 = vector.broadcast %423 : f32 to vector<1x128xf32>
    %425 = arith.mulf %422, %424 : vector<1x128xf32>
    %426 = arith.addf %421, %425 : vector<1x128xf32>
    %427 = vector.extract_strided_slice %388 {offsets = [3, 0], sizes = [1, 128], strides = [1, 1]} : vector<4x128xf32> to vector<1x128xf32>
    %c77 = arith.constant 77 : index
    %428 = memref.load %arg1[%c77] : memref<96xf32, #tpu.memory_space<smem>>
    %429 = vector.broadcast %428 : f32 to vector<1x128xf32>
    %430 = arith.mulf %427, %429 : vector<1x128xf32>
    %431 = arith.addf %426, %430 : vector<1x128xf32>
    %c17_35 = arith.constant 17 : index
    %432 = memref.load %arg2[%c17_35] : memref<24xf32, #tpu.memory_space<smem>>
    %433 = vector.broadcast %432 : f32 to vector<1x128xf32>
    %434 = arith.addf %431, %433 : vector<1x128xf32>
    %cst_36 = arith.constant 0.000000e+00 : f32
    %435 = vector.broadcast %cst_36 : f32 to vector<1x128xf32>
    %436 = arith.maximumf %434, %435 : vector<1x128xf32>
    %437 = vector.extract_strided_slice %388 {offsets = [0, 0], sizes = [1, 128], strides = [1, 1]} : vector<4x128xf32> to vector<1x128xf32>
    %c66 = arith.constant 66 : index
    %438 = memref.load %arg1[%c66] : memref<96xf32, #tpu.memory_space<smem>>
    %439 = vector.broadcast %438 : f32 to vector<1x128xf32>
    %440 = arith.mulf %437, %439 : vector<1x128xf32>
    %441 = vector.extract_strided_slice %388 {offsets = [1, 0], sizes = [1, 128], strides = [1, 1]} : vector<4x128xf32> to vector<1x128xf32>
    %c70 = arith.constant 70 : index
    %442 = memref.load %arg1[%c70] : memref<96xf32, #tpu.memory_space<smem>>
    %443 = vector.broadcast %442 : f32 to vector<1x128xf32>
    %444 = arith.mulf %441, %443 : vector<1x128xf32>
    %445 = arith.addf %440, %444 : vector<1x128xf32>
    %446 = vector.extract_strided_slice %388 {offsets = [2, 0], sizes = [1, 128], strides = [1, 1]} : vector<4x128xf32> to vector<1x128xf32>
    %c74 = arith.constant 74 : index
    %447 = memref.load %arg1[%c74] : memref<96xf32, #tpu.memory_space<smem>>
    %448 = vector.broadcast %447 : f32 to vector<1x128xf32>
    %449 = arith.mulf %446, %448 : vector<1x128xf32>
    %450 = arith.addf %445, %449 : vector<1x128xf32>
    %451 = vector.extract_strided_slice %388 {offsets = [3, 0], sizes = [1, 128], strides = [1, 1]} : vector<4x128xf32> to vector<1x128xf32>
    %c78 = arith.constant 78 : index
    %452 = memref.load %arg1[%c78] : memref<96xf32, #tpu.memory_space<smem>>
    %453 = vector.broadcast %452 : f32 to vector<1x128xf32>
    %454 = arith.mulf %451, %453 : vector<1x128xf32>
    %455 = arith.addf %450, %454 : vector<1x128xf32>
    %c18_37 = arith.constant 18 : index
    %456 = memref.load %arg2[%c18_37] : memref<24xf32, #tpu.memory_space<smem>>
    %457 = vector.broadcast %456 : f32 to vector<1x128xf32>
    %458 = arith.addf %455, %457 : vector<1x128xf32>
    %cst_38 = arith.constant 0.000000e+00 : f32
    %459 = vector.broadcast %cst_38 : f32 to vector<1x128xf32>
    %460 = arith.maximumf %458, %459 : vector<1x128xf32>
    %461 = vector.extract_strided_slice %388 {offsets = [0, 0], sizes = [1, 128], strides = [1, 1]} : vector<4x128xf32> to vector<1x128xf32>
    %c67 = arith.constant 67 : index
    %462 = memref.load %arg1[%c67] : memref<96xf32, #tpu.memory_space<smem>>
    %463 = vector.broadcast %462 : f32 to vector<1x128xf32>
    %464 = arith.mulf %461, %463 : vector<1x128xf32>
    %465 = vector.extract_strided_slice %388 {offsets = [1, 0], sizes = [1, 128], strides = [1, 1]} : vector<4x128xf32> to vector<1x128xf32>
    %c71 = arith.constant 71 : index
    %466 = memref.load %arg1[%c71] : memref<96xf32, #tpu.memory_space<smem>>
    %467 = vector.broadcast %466 : f32 to vector<1x128xf32>
    %468 = arith.mulf %465, %467 : vector<1x128xf32>
    %469 = arith.addf %464, %468 : vector<1x128xf32>
    %470 = vector.extract_strided_slice %388 {offsets = [2, 0], sizes = [1, 128], strides = [1, 1]} : vector<4x128xf32> to vector<1x128xf32>
    %c75 = arith.constant 75 : index
    %471 = memref.load %arg1[%c75] : memref<96xf32, #tpu.memory_space<smem>>
    %472 = vector.broadcast %471 : f32 to vector<1x128xf32>
    %473 = arith.mulf %470, %472 : vector<1x128xf32>
    %474 = arith.addf %469, %473 : vector<1x128xf32>
    %475 = vector.extract_strided_slice %388 {offsets = [3, 0], sizes = [1, 128], strides = [1, 1]} : vector<4x128xf32> to vector<1x128xf32>
    %c79 = arith.constant 79 : index
    %476 = memref.load %arg1[%c79] : memref<96xf32, #tpu.memory_space<smem>>
    %477 = vector.broadcast %476 : f32 to vector<1x128xf32>
    %478 = arith.mulf %475, %477 : vector<1x128xf32>
    %479 = arith.addf %474, %478 : vector<1x128xf32>
    %c19_39 = arith.constant 19 : index
    %480 = memref.load %arg2[%c19_39] : memref<24xf32, #tpu.memory_space<smem>>
    %481 = vector.broadcast %480 : f32 to vector<1x128xf32>
    %482 = arith.addf %479, %481 : vector<1x128xf32>
    %cst_40 = arith.constant 0.000000e+00 : f32
    %483 = vector.broadcast %cst_40 : f32 to vector<1x128xf32>
    %484 = arith.maximumf %482, %483 : vector<1x128xf32>
    %485 = tpu.concatenate %412, %436, %460, %484 in 0 : vector<1x128xf32>, vector<1x128xf32>, vector<1x128xf32>, vector<1x128xf32> -> vector<4x128xf32>
    %486 = vector.extract_strided_slice %485 {offsets = [0, 0], sizes = [1, 128], strides = [1, 1]} : vector<4x128xf32> to vector<1x128xf32>
    %c80 = arith.constant 80 : index
    %487 = memref.load %arg1[%c80] : memref<96xf32, #tpu.memory_space<smem>>
    %488 = vector.broadcast %487 : f32 to vector<1x128xf32>
    %489 = arith.mulf %486, %488 : vector<1x128xf32>
    %490 = vector.extract_strided_slice %485 {offsets = [1, 0], sizes = [1, 128], strides = [1, 1]} : vector<4x128xf32> to vector<1x128xf32>
    %c84 = arith.constant 84 : index
    %491 = memref.load %arg1[%c84] : memref<96xf32, #tpu.memory_space<smem>>
    %492 = vector.broadcast %491 : f32 to vector<1x128xf32>
    %493 = arith.mulf %490, %492 : vector<1x128xf32>
    %494 = arith.addf %489, %493 : vector<1x128xf32>
    %495 = vector.extract_strided_slice %485 {offsets = [2, 0], sizes = [1, 128], strides = [1, 1]} : vector<4x128xf32> to vector<1x128xf32>
    %c88 = arith.constant 88 : index
    %496 = memref.load %arg1[%c88] : memref<96xf32, #tpu.memory_space<smem>>
    %497 = vector.broadcast %496 : f32 to vector<1x128xf32>
    %498 = arith.mulf %495, %497 : vector<1x128xf32>
    %499 = arith.addf %494, %498 : vector<1x128xf32>
    %500 = vector.extract_strided_slice %485 {offsets = [3, 0], sizes = [1, 128], strides = [1, 1]} : vector<4x128xf32> to vector<1x128xf32>
    %c92 = arith.constant 92 : index
    %501 = memref.load %arg1[%c92] : memref<96xf32, #tpu.memory_space<smem>>
    %502 = vector.broadcast %501 : f32 to vector<1x128xf32>
    %503 = arith.mulf %500, %502 : vector<1x128xf32>
    %504 = arith.addf %499, %503 : vector<1x128xf32>
    %c20_41 = arith.constant 20 : index
    %505 = memref.load %arg2[%c20_41] : memref<24xf32, #tpu.memory_space<smem>>
    %506 = vector.broadcast %505 : f32 to vector<1x128xf32>
    %507 = arith.addf %504, %506 : vector<1x128xf32>
    %cst_42 = arith.constant 0.000000e+00 : f32
    %508 = vector.broadcast %cst_42 : f32 to vector<1x128xf32>
    %509 = arith.maximumf %507, %508 : vector<1x128xf32>
    %510 = vector.extract_strided_slice %485 {offsets = [0, 0], sizes = [1, 128], strides = [1, 1]} : vector<4x128xf32> to vector<1x128xf32>
    %c81 = arith.constant 81 : index
    %511 = memref.load %arg1[%c81] : memref<96xf32, #tpu.memory_space<smem>>
    %512 = vector.broadcast %511 : f32 to vector<1x128xf32>
    %513 = arith.mulf %510, %512 : vector<1x128xf32>
    %514 = vector.extract_strided_slice %485 {offsets = [1, 0], sizes = [1, 128], strides = [1, 1]} : vector<4x128xf32> to vector<1x128xf32>
    %c85 = arith.constant 85 : index
    %515 = memref.load %arg1[%c85] : memref<96xf32, #tpu.memory_space<smem>>
    %516 = vector.broadcast %515 : f32 to vector<1x128xf32>
    %517 = arith.mulf %514, %516 : vector<1x128xf32>
    %518 = arith.addf %513, %517 : vector<1x128xf32>
    %519 = vector.extract_strided_slice %485 {offsets = [2, 0], sizes = [1, 128], strides = [1, 1]} : vector<4x128xf32> to vector<1x128xf32>
    %c89 = arith.constant 89 : index
    %520 = memref.load %arg1[%c89] : memref<96xf32, #tpu.memory_space<smem>>
    %521 = vector.broadcast %520 : f32 to vector<1x128xf32>
    %522 = arith.mulf %519, %521 : vector<1x128xf32>
    %523 = arith.addf %518, %522 : vector<1x128xf32>
    %524 = vector.extract_strided_slice %485 {offsets = [3, 0], sizes = [1, 128], strides = [1, 1]} : vector<4x128xf32> to vector<1x128xf32>
    %c93 = arith.constant 93 : index
    %525 = memref.load %arg1[%c93] : memref<96xf32, #tpu.memory_space<smem>>
    %526 = vector.broadcast %525 : f32 to vector<1x128xf32>
    %527 = arith.mulf %524, %526 : vector<1x128xf32>
    %528 = arith.addf %523, %527 : vector<1x128xf32>
    %c21_43 = arith.constant 21 : index
    %529 = memref.load %arg2[%c21_43] : memref<24xf32, #tpu.memory_space<smem>>
    %530 = vector.broadcast %529 : f32 to vector<1x128xf32>
    %531 = arith.addf %528, %530 : vector<1x128xf32>
    %cst_44 = arith.constant 0.000000e+00 : f32
    %532 = vector.broadcast %cst_44 : f32 to vector<1x128xf32>
    %533 = arith.maximumf %531, %532 : vector<1x128xf32>
    %534 = vector.extract_strided_slice %485 {offsets = [0, 0], sizes = [1, 128], strides = [1, 1]} : vector<4x128xf32> to vector<1x128xf32>
    %c82 = arith.constant 82 : index
    %535 = memref.load %arg1[%c82] : memref<96xf32, #tpu.memory_space<smem>>
    %536 = vector.broadcast %535 : f32 to vector<1x128xf32>
    %537 = arith.mulf %534, %536 : vector<1x128xf32>
    %538 = vector.extract_strided_slice %485 {offsets = [1, 0], sizes = [1, 128], strides = [1, 1]} : vector<4x128xf32> to vector<1x128xf32>
    %c86 = arith.constant 86 : index
    %539 = memref.load %arg1[%c86] : memref<96xf32, #tpu.memory_space<smem>>
    %540 = vector.broadcast %539 : f32 to vector<1x128xf32>
    %541 = arith.mulf %538, %540 : vector<1x128xf32>
    %542 = arith.addf %537, %541 : vector<1x128xf32>
    %543 = vector.extract_strided_slice %485 {offsets = [2, 0], sizes = [1, 128], strides = [1, 1]} : vector<4x128xf32> to vector<1x128xf32>
    %c90 = arith.constant 90 : index
    %544 = memref.load %arg1[%c90] : memref<96xf32, #tpu.memory_space<smem>>
    %545 = vector.broadcast %544 : f32 to vector<1x128xf32>
    %546 = arith.mulf %543, %545 : vector<1x128xf32>
    %547 = arith.addf %542, %546 : vector<1x128xf32>
    %548 = vector.extract_strided_slice %485 {offsets = [3, 0], sizes = [1, 128], strides = [1, 1]} : vector<4x128xf32> to vector<1x128xf32>
    %c94 = arith.constant 94 : index
    %549 = memref.load %arg1[%c94] : memref<96xf32, #tpu.memory_space<smem>>
    %550 = vector.broadcast %549 : f32 to vector<1x128xf32>
    %551 = arith.mulf %548, %550 : vector<1x128xf32>
    %552 = arith.addf %547, %551 : vector<1x128xf32>
    %c22_45 = arith.constant 22 : index
    %553 = memref.load %arg2[%c22_45] : memref<24xf32, #tpu.memory_space<smem>>
    %554 = vector.broadcast %553 : f32 to vector<1x128xf32>
    %555 = arith.addf %552, %554 : vector<1x128xf32>
    %cst_46 = arith.constant 0.000000e+00 : f32
    %556 = vector.broadcast %cst_46 : f32 to vector<1x128xf32>
    %557 = arith.maximumf %555, %556 : vector<1x128xf32>
    %558 = vector.extract_strided_slice %485 {offsets = [0, 0], sizes = [1, 128], strides = [1, 1]} : vector<4x128xf32> to vector<1x128xf32>
    %c83 = arith.constant 83 : index
    %559 = memref.load %arg1[%c83] : memref<96xf32, #tpu.memory_space<smem>>
    %560 = vector.broadcast %559 : f32 to vector<1x128xf32>
    %561 = arith.mulf %558, %560 : vector<1x128xf32>
    %562 = vector.extract_strided_slice %485 {offsets = [1, 0], sizes = [1, 128], strides = [1, 1]} : vector<4x128xf32> to vector<1x128xf32>
    %c87 = arith.constant 87 : index
    %563 = memref.load %arg1[%c87] : memref<96xf32, #tpu.memory_space<smem>>
    %564 = vector.broadcast %563 : f32 to vector<1x128xf32>
    %565 = arith.mulf %562, %564 : vector<1x128xf32>
    %566 = arith.addf %561, %565 : vector<1x128xf32>
    %567 = vector.extract_strided_slice %485 {offsets = [2, 0], sizes = [1, 128], strides = [1, 1]} : vector<4x128xf32> to vector<1x128xf32>
    %c91 = arith.constant 91 : index
    %568 = memref.load %arg1[%c91] : memref<96xf32, #tpu.memory_space<smem>>
    %569 = vector.broadcast %568 : f32 to vector<1x128xf32>
    %570 = arith.mulf %567, %569 : vector<1x128xf32>
    %571 = arith.addf %566, %570 : vector<1x128xf32>
    %572 = vector.extract_strided_slice %485 {offsets = [3, 0], sizes = [1, 128], strides = [1, 1]} : vector<4x128xf32> to vector<1x128xf32>
    %c95 = arith.constant 95 : index
    %573 = memref.load %arg1[%c95] : memref<96xf32, #tpu.memory_space<smem>>
    %574 = vector.broadcast %573 : f32 to vector<1x128xf32>
    %575 = arith.mulf %572, %574 : vector<1x128xf32>
    %576 = arith.addf %571, %575 : vector<1x128xf32>
    %c23_47 = arith.constant 23 : index
    %577 = memref.load %arg2[%c23_47] : memref<24xf32, #tpu.memory_space<smem>>
    %578 = vector.broadcast %577 : f32 to vector<1x128xf32>
    %579 = arith.addf %576, %578 : vector<1x128xf32>
    %cst_48 = arith.constant 0.000000e+00 : f32
    %580 = vector.broadcast %cst_48 : f32 to vector<1x128xf32>
    %581 = arith.maximumf %579, %580 : vector<1x128xf32>
    %582 = tpu.concatenate %509, %533, %557, %581 in 0 : vector<1x128xf32>, vector<1x128xf32>, vector<1x128xf32>, vector<1x128xf32> -> vector<4x128xf32>
    %583 = vector.extract_strided_slice %582 {offsets = [0, 0], sizes = [1, 128], strides = [1, 1]} : vector<4x128xf32> to vector<1x128xf32>
    %c0_49 = arith.constant 0 : index
    %584 = memref.load %arg3[%c0_49] : memref<4xf32, #tpu.memory_space<smem>>
    %585 = vector.broadcast %584 : f32 to vector<1x128xf32>
    %586 = arith.mulf %583, %585 : vector<1x128xf32>
    %587 = vector.extract_strided_slice %582 {offsets = [1, 0], sizes = [1, 128], strides = [1, 1]} : vector<4x128xf32> to vector<1x128xf32>
    %c1_50 = arith.constant 1 : index
    %588 = memref.load %arg3[%c1_50] : memref<4xf32, #tpu.memory_space<smem>>
    %589 = vector.broadcast %588 : f32 to vector<1x128xf32>
    %590 = arith.mulf %587, %589 : vector<1x128xf32>
    %591 = arith.addf %586, %590 : vector<1x128xf32>
    %592 = vector.extract_strided_slice %582 {offsets = [2, 0], sizes = [1, 128], strides = [1, 1]} : vector<4x128xf32> to vector<1x128xf32>
    %c2_51 = arith.constant 2 : index
    %593 = memref.load %arg3[%c2_51] : memref<4xf32, #tpu.memory_space<smem>>
    %594 = vector.broadcast %593 : f32 to vector<1x128xf32>
    %595 = arith.mulf %592, %594 : vector<1x128xf32>
    %596 = arith.addf %591, %595 : vector<1x128xf32>
    %597 = vector.extract_strided_slice %582 {offsets = [3, 0], sizes = [1, 128], strides = [1, 1]} : vector<4x128xf32> to vector<1x128xf32>
    %c3_52 = arith.constant 3 : index
    %598 = memref.load %arg3[%c3_52] : memref<4xf32, #tpu.memory_space<smem>>
    %599 = vector.broadcast %598 : f32 to vector<1x128xf32>
    %600 = arith.mulf %597, %599 : vector<1x128xf32>
    %601 = arith.addf %596, %600 : vector<1x128xf32>
    %c0_53 = arith.constant 0 : index
    %602 = memref.load %arg4[%c0_53] : memref<1xf32, #tpu.memory_space<smem>>
    %603 = vector.broadcast %602 : f32 to vector<1x128xf32>
    %604 = arith.addf %601, %603 : vector<1x128xf32>
    %605 = arith.negf %604 : vector<1x128xf32>
    %606 = math.exp %605 : vector<1x128xf32>
    %cst_54 = arith.constant 1.000000e+00 : f32
    %607 = vector.broadcast %cst_54 : f32 to vector<1x128xf32>
    %608 = arith.addf %607, %606 : vector<1x128xf32>
    %609 = arith.divf %607, %608 : vector<1x128xf32>
    %c0_55 = arith.constant 0 : index
    %c0_56 = arith.constant 0 : index
    %610 = vector.load %arg6[%c0_55, %c0_56] : memref<1x128xf32, #tpu.memory_space<vmem>>, vector<1x128xf32>
    tpu.vector_store %arg6[%c0_55, %c0_56], %609 {strides = array<i32>} : memref<1x128xf32, #tpu.memory_space<vmem>>, vector<1x128xf32>,
    return
  }
  func.func @transform_0(%arg0: i32) -> i32 {
    %c0_i32 = arith.constant 0 : i32
    %c0_i32_0 = arith.constant 0 : i32
    return %c0_i32 : i32
  }
  func.func @transform_1(%arg0: i32) -> i32 {
    %c0_i32 = arith.constant 0 : i32
    %c0_i32_0 = arith.constant 0 : i32
    return %c0_i32 : i32
  }
  func.func @transform_2(%arg0: i32) -> i32 {
    %c0_i32 = arith.constant 0 : i32
    %c0_i32_0 = arith.constant 0 : i32
    return %c0_i32 : i32
  }
  func.func @transform_3(%arg0: i32) -> i32 {
    %c0_i32 = arith.constant 0 : i32
    %c0_i32_0 = arith.constant 0 : i32
    return %c0_i32 : i32
  }
  func.func @transform_4(%arg0: i32) -> (i32, i32) {
    %c0_i32 = arith.constant 0 : i32
    %c0_i32_0 = arith.constant 0 : i32
    return %c0_i32, %arg0 : i32, i32
  }
  func.func @transform_5(%arg0: i32) -> (i32, i32) {
    %c0_i32 = arith.constant 0 : i32
    %c0_i32_0 = arith.constant 0 : i32
    return %c0_i32, %arg0 : i32, i32
  }
}

</mosaic_0001>

<llo_original>
// kernel: tpu_custom_call.1
$region0: #{tpu_custom_call.1}
  #allocation0 [shape = 'u32[]', space=smem, size = 0x4, offset = 0x4, fixed_abs, tag = 'smem constant byte address 0x4 - core index']
  #allocation1 [shape = 'u32[144,128]{1,0:T(1,128)}', space=vmem, size = 0x12000, scoped, tag = 'internal scratch']
  #allocation2 [shape = 'f32[1]{0:T(128)S(6)}', space=smem, size = 0x200, scoped, tag = 'scoped memory for tpu_custom_call.1']
  %s0 = inlined_call_operand.vmem [shape: f32[96], index: 0, kind: input, shape index: {}]
  %s1 = inlined_call_operand.vmem [shape: f32[24], index: 1, kind: input, shape index: {}]
  %s2 = inlined_call_operand.vmem [shape: f32[4], index: 2, kind: input, shape index: {}]
  %s3 = inlined_call_operand.<no memory space> [shape: f32[1], index: 3, kind: input, shape index: {}]
  %s4 = inlined_call_operand.vmem [shape: f32[4,128], index: 4, kind: input, shape index: {}]
  %s5 = inlined_call_operand.hbm [shape: f32[1,128], index: 5, kind: output, shape index: {}]
  %s6 = sld [smem:[#allocation0]]
  $region42: #{tpu_custom_call.1} parent=0
    _
  %s8 = ssub.s32 1, %s6
  %s9 = scalar_select 0, %s8, %s6
  %10 = sst [smem:[#allocation2]] %s3
  $region1: #{tpu_custom_call.1} parent=0
    #allocation3 [shape = 'u8[512]{0}', space=smem, size = 0x200, scoped, tag = 'input window, operand 0, single buffered']
    #allocation4 [shape = 's32[1]{0}', space=sflag, size = 0x4, scoped, tag = 'scoped memory for tpu_custom_call.1']
    #allocation5 [shape = 's32[1]{0}', space=sflag, size = 0x4, scoped, tag = 'scoped memory for tpu_custom_call.1']
    #allocation6 [shape = 'u8[512]{0}', space=smem, size = 0x200, scoped, tag = 'input window, operand 1, single buffered']
    #allocation7 [shape = 's32[1]{0}', space=sflag, size = 0x4, scoped, tag = 'scoped memory for tpu_custom_call.1']
    #allocation8 [shape = 'u8[512]{0}', space=smem, size = 0x200, scoped, tag = 'input window, operand 2, single buffered']
    #allocation9 [shape = 'u8[512]{0}', space=vmem, size = 0x400, scoped, tag = 'output window, operand 0, single buffered']
    %11 = vsyncpa [#allocation5], 0
    %12 = vsyncpa [#allocation7], 0
    %13 = vsyncpa [#allocation4], 0
    // Predicated region
    $region2: #{tpu_custom_call.1} parent=1 // pred_check
      _
    $region3: #{tpu_custom_call.1} parent=1 // pred_check_branch
      %15 = sbr.rel (0) target = $region5
    $region4: #{tpu_custom_call.1} parent=1 // pred_region
      %s17 = ssub.s32 16, 16
      %18 = vsyncadd [#allocation5], %s17
      %s20 = sshll.u32 %s0, 4
      %s21 = int_to_ptr.vmem [resolvable:$true] %s20
      %23 = dma.vmem_to_smem %s21, 16, [#allocation3], [#allocation5]
    $region5: #{tpu_custom_call.1} parent=1 // pred_fallthru
      _
    // Predicated region
    $region6: #{tpu_custom_call.1} parent=1 // pred_check
      _
    $region7: #{tpu_custom_call.1} parent=1 // pred_check_branch
      %25 = sbr.rel (0) target = $region9
    $region8: #{tpu_custom_call.1} parent=1 // pred_region
      %s27 = ssub.s32 16, 16
      %28 = vsyncadd [#allocation7], %s27
      %s30 = sshll.u32 %s1, 4
      %s31 = int_to_ptr.vmem [resolvable:$true] %s30
      %33 = dma.vmem_to_smem %s31, 16, [#allocation6], [#allocation7]
    $region9: #{tpu_custom_call.1} parent=1 // pred_fallthru
      _
    // Predicated region
    $region10: #{tpu_custom_call.1} parent=1 // pred_check
      _
    $region11: #{tpu_custom_call.1} parent=1 // pred_check_branch
      %35 = sbr.rel (0) target = $region13
    $region12: #{tpu_custom_call.1} parent=1 // pred_region
      %s37 = ssub.s32 16, 16
      %38 = vsyncadd [#allocation7], %s37
      %s40 = sshll.u32 %s2, 4
      %s41 = int_to_ptr.vmem [resolvable:$true] %s40
      %43 = dma.vmem_to_smem %s41, 16, [#allocation8], [#allocation7]
    $region13: #{tpu_custom_call.1} parent=1 // pred_fallthru
      _
    // Predicated region
    $region14: #{tpu_custom_call.1} parent=1 // pred_check
      _
    $region15: #{tpu_custom_call.1} parent=1 // pred_check_branch
      %45 = sbr.rel (0) target = $region17
    $region16: #{tpu_custom_call.1} parent=1 // pred_region
      _
    $region17: #{tpu_custom_call.1} parent=1 // pred_fallthru
      _
    // Predicated region
    $region18: #{tpu_custom_call.1} parent=1 // pred_check
      _
    $region19: #{tpu_custom_call.1} parent=1 // pred_check_branch
      %47 = sbr.rel (0) target = $region21
    $region20: #{tpu_custom_call.1} parent=1 // pred_region
      _
    $region21: #{tpu_custom_call.1} parent=1 // pred_fallthru
      _
    // Predicated region
    $region22: #{tpu_custom_call.1} parent=1 // pred_check
      _
    $region23: #{tpu_custom_call.1} parent=1 // pred_check_branch
      %49 = sbr.rel (0) target = $region25
    $region24: #{tpu_custom_call.1} parent=1 // pred_region
      %50 = dma.done [#allocation5], 16
    $region25: #{tpu_custom_call.1} parent=1 // pred_fallthru
      _
    // Predicated region
    $region26: #{tpu_custom_call.1} parent=1 // pred_check
      _
    $region27: #{tpu_custom_call.1} parent=1 // pred_check_branch
      %52 = sbr.rel (0) target = $region29
    $region28: #{tpu_custom_call.1} parent=1 // pred_region
      %53 = dma.done [#allocation7], 16
    $region29: #{tpu_custom_call.1} parent=1 // pred_fallthru
      _
    // Predicated region
    $region30: #{tpu_custom_call.1} parent=1 // pred_check
      _
    $region31: #{tpu_custom_call.1} parent=1 // pred_check_branch
      %55 = sbr.rel (0) target = $region33
    $region32: #{tpu_custom_call.1} parent=1 // pred_region
      %56 = dma.done [#allocation7], 16
    $region33: #{tpu_custom_call.1} parent=1 // pred_fallthru
      _
    %57 = sfence
    %v58 = vld [vmem:[%s4] sm:$0xf]
    %s59 = sld [smem:[#allocation3]]
    %v60 = vstv %s59
    %v61 = vmul.f32 %v58, %v60
    %s62 = sld [smem:[#allocation3 + $0x4]]
    %v63 = vstv %s62
    %v64 = vmul.f32 %v58, %v63
    %v66 = vrot.slane %v64, 1
    %v68 = vadd.f32 %v61, %v66
    %s69 = sld [smem:[#allocation3 + $0x8]]
    %v70 = vstv %s69
    %v71 = vmul.f32 %v58, %v70
    %v73 = vrot.slane %v71, 2
    %v75 = vadd.f32 %v68, %v73
    %s76 = sld [smem:[#allocation3 + $0xc]]
    %v77 = vstv %s76
    %v78 = vmul.f32 %v58, %v77
    %v80 = vrot.slane %v78, 3
    %v82 = vadd.f32 %v75, %v80
    %s83 = sld [smem:[#allocation6]]
    %v84 = vstv %s83
    %v85 = vadd.f32 %v82, %v84
    %v86 = vmax.f32 %v85, 0.0
    %s87 = sld [smem:[#allocation3 + $0x1]]
    %v88 = vstv %s87
    %v89 = vmul.f32 %v58, %v88
    %s90 = sld [smem:[#allocation3 + $0x5]]
    %v91 = vstv %s90
    %v92 = vmul.f32 %v58, %v91
    %v94 = vrot.slane %v92, 1
    %v96 = vadd.f32 %v89, %v94
    %s97 = sld [smem:[#allocation3 + $0x9]]
    %v98 = vstv %s97
    %v99 = vmul.f32 %v58, %v98
    %v101 = vrot.slane %v99, 2
    %v103 = vadd.f32 %v96, %v101
    %s104 = sld [smem:[#allocation3 + $0xd]]
    %v105 = vstv %s104
    %v106 = vmul.f32 %v58, %v105
    %v108 = vrot.slane %v106, 3
    %v110 = vadd.f32 %v103, %v108
    %s111 = sld [smem:[#allocation6 + $0x1]]
    %v112 = vstv %s111
    %v113 = vadd.f32 %v110, %v112
    %v114 = vmax.f32 %v113, 0.0
    %s115 = sld [smem:[#allocation3 + $0x2]]
    %v116 = vstv %s115
    %v117 = vmul.f32 %v58, %v116
    %s118 = sld [smem:[#allocation3 + $0x6]]
    %v119 = vstv %s118
    %v120 = vmul.f32 %v58, %v119
    %v122 = vrot.slane %v120, 1
    %v124 = vadd.f32 %v117, %v122
    %s125 = sld [smem:[#allocation3 + $0xa]]
    %v126 = vstv %s125
    %v127 = vmul.f32 %v58, %v126
    %v129 = vrot.slane %v127, 2
    %v131 = vadd.f32 %v124, %v129
    %s132 = sld [smem:[#allocation3 + $0xe]]
    %v133 = vstv %s132
    %v134 = vmul.f32 %v58, %v133
    %v136 = vrot.slane %v134, 3
    %v138 = vadd.f32 %v131, %v136
    %s139 = sld [smem:[#allocation6 + $0x2]]
    %v140 = vstv %s139
    %v141 = vadd.f32 %v138, %v140
    %v142 = vmax.f32 %v141, 0.0
    %s143 = sld [smem:[#allocation3 + $0x3]]
    %v144 = vstv %s143
    %v145 = vmul.f32 %v58, %v144
    %s146 = sld [smem:[#allocation3 + $0x7]]
    %v147 = vstv %s146
    %v148 = vmul.f32 %v58, %v147
    %v150 = vrot.slane %v148, 1
    %v152 = vadd.f32 %v145, %v150
    %s153 = sld [smem:[#allocation3 + $0xb]]
    %v154 = vstv %s153
    %v155 = vmul.f32 %v58, %v154
    %v157 = vrot.slane %v155, 2
    %v159 = vadd.f32 %v152, %v157
    %s160 = sld [smem:[#allocation3 + $0xf]]
    %v161 = vstv %s160
    %v162 = vmul.f32 %v58, %v161
    %v164 = vrot.slane %v162, 3
    %v166 = vadd.f32 %v159, %v164
    %s167 = sld [smem:[#allocation6 + $0x3]]
    %v168 = vstv %s167
    %v169 = vadd.f32 %v166, %v168
    %v170 = vmax.f32 %v169, 0.0
    %v172 = vrot.slane %v114, 7
    %v175 = vrot.slane %v142, 6
    %v178 = vrot.slane %v170, 5
    %vm180 = vcmask 1040384
    %v181 = vsel %vm180, %v86, %v172
    %vm182 = vcmask 1041408
    %v183 = vsel %vm182, %v181, %v175
    %vm184 = vcmask 1042432
    %v185 = vsel %vm184, %v183, %v178
    %s186 = sld [smem:[#allocation3 + $0x10]]
    %v187 = vstv %s186
    %v188 = vmul.f32 %v185, %v187
    %s189 = sld [smem:[#allocation3 + $0x14]]
    %v190 = vstv %s189
    %v191 = vmul.f32 %v185, %v190
    %v193 = vrot.slane %v191, 1
    %v195 = vadd.f32 %v188, %v193
    %s196 = sld [smem:[#allocation3 + $0x18]]
    %v197 = vstv %s196
    %v198 = vmul.f32 %v185, %v197
    %v200 = vrot.slane %v198, 2
    %v202 = vadd.f32 %v195, %v200
    %s203 = sld [smem:[#allocation3 + $0x1c]]
    %v204 = vstv %s203
    %v205 = vmul.f32 %v185, %v204
    %v207 = vrot.slane %v205, 3
    %v209 = vadd.f32 %v202, %v207
    %s210 = sld [smem:[#allocation6 + $0x4]]
    %v211 = vstv %s210
    %v212 = vadd.f32 %v209, %v211
    %v213 = vmax.f32 %v212, 0.0
    %s214 = sld [smem:[#allocation3 + $0x11]]
    %v215 = vstv %s214
    %v216 = vmul.f32 %v185, %v215
    %s217 = sld [smem:[#allocation3 + $0x15]]
    %v218 = vstv %s217
    %v219 = vmul.f32 %v185, %v218
    %v221 = vrot.slane %v219, 1
    %v223 = vadd.f32 %v216, %v221
    %s224 = sld [smem:[#allocation3 + $0x19]]
    %v225 = vstv %s224
    %v226 = vmul.f32 %v185, %v225
    %v228 = vrot.slane %v226, 2
    %v230 = vadd.f32 %v223, %v228
    %s231 = sld [smem:[#allocation3 + $0x1d]]
    %v232 = vstv %s231
    %v233 = vmul.f32 %v185, %v232
    %v235 = vrot.slane %v233, 3
    %v237 = vadd.f32 %v230, %v235
    %s238 = sld [smem:[#allocation6 + $0x5]]
    %v239 = vstv %s238
    %v240 = vadd.f32 %v237, %v239
    %v241 = vmax.f32 %v240, 0.0
    %s242 = sld [smem:[#allocation3 + $0x12]]
    %v243 = vstv %s242
    %v244 = vmul.f32 %v185, %v243
    %s245 = sld [smem:[#allocation3 + $0x16]]
    %v246 = vstv %s245
    %v247 = vmul.f32 %v185, %v246
    %v249 = vrot.slane %v247, 1
    %v251 = vadd.f32 %v244, %v249
    %s252 = sld [smem:[#allocation3 + $0x1a]]
    %v253 = vstv %s252
    %v254 = vmul.f32 %v185, %v253
    %v256 = vrot.slane %v254, 2
    %v258 = vadd.f32 %v251, %v256
    %s259 = sld [smem:[#allocation3 + $0x1e]]
    %v260 = vstv %s259
    %v261 = vmul.f32 %v185, %v260
    %v263 = vrot.slane %v261, 3
    %v265 = vadd.f32 %v258, %v263
    %s266 = sld [smem:[#allocation6 + $0x6]]
    %v267 = vstv %s266
    %v268 = vadd.f32 %v265, %v267
    %v269 = vmax.f32 %v268, 0.0
    %s270 = sld [smem:[#allocation3 + $0x13]]
    %v271 = vstv %s270
    %v272 = vmul.f32 %v185, %v271
    %s273 = sld [smem:[#allocation3 + $0x17]]
    %v274 = vstv %s273
    %v275 = vmul.f32 %v185, %v274
    %v277 = vrot.slane %v275, 1
    %v279 = vadd.f32 %v272, %v277
    %s280 = sld [smem:[#allocation3 + $0x1b]]
    %v281 = vstv %s280
    %v282 = vmul.f32 %v185, %v281
    %v284 = vrot.slane %v282, 2
    %v286 = vadd.f32 %v279, %v284
    %s287 = sld [smem:[#allocation3 + $0x1f]]
    %v288 = vstv %s287
    %v289 = vmul.f32 %v185, %v288
    %v291 = vrot.slane %v289, 3
    %v293 = vadd.f32 %v286, %v291
    %s294 = sld [smem:[#allocation6 + $0x7]]
    %v295 = vstv %s294
    %v296 = vadd.f32 %v293, %v295
    %v297 = vmax.f32 %v296, 0.0
    %v299 = vrot.slane %v241, 7
    %v302 = vrot.slane %v269, 6
    %v305 = vrot.slane %v297, 5
    %v307 = vsel %vm180, %v213, %v299
    %v308 = vsel %vm182, %v307, %v302
    %v309 = vsel %vm184, %v308, %v305
    %s310 = sld [smem:[#allocation3 + $0x20]]
    %v311 = vstv %s310
    %v312 = vmul.f32 %v309, %v311
    %s313 = sld [smem:[#allocation3 + $0x24]]
    %v314 = vstv %s313
    %v315 = vmul.f32 %v309, %v314
    %v317 = vrot.slane %v315, 1
    %v319 = vadd.f32 %v312, %v317
    %s320 = sld [smem:[#allocation3 + $0x28]]
    %v321 = vstv %s320
    %v322 = vmul.f32 %v309, %v321
    %v324 = vrot.slane %v322, 2
    %v326 = vadd.f32 %v319, %v324
    %s327 = sld [smem:[#allocation3 + $0x2c]]
    %v328 = vstv %s327
    %v329 = vmul.f32 %v309, %v328
    %v331 = vrot.slane %v329, 3
    %v333 = vadd.f32 %v326, %v331
    %s334 = sld [smem:[#allocation6 + $0x8]]
    %v335 = vstv %s334
    %v336 = vadd.f32 %v333, %v335
    %v337 = vmax.f32 %v336, 0.0
    %s338 = sld [smem:[#allocation3 + $0x21]]
    %v339 = vstv %s338
    %v340 = vmul.f32 %v309, %v339
    %s341 = sld [smem:[#allocation3 + $0x25]]
    %v342 = vstv %s341
    %v343 = vmul.f32 %v309, %v342
    %v345 = vrot.slane %v343, 1
    %v347 = vadd.f32 %v340, %v345
    %s348 = sld [smem:[#allocation3 + $0x29]]
    %v349 = vstv %s348
    %v350 = vmul.f32 %v309, %v349
    %v352 = vrot.slane %v350, 2
    %v354 = vadd.f32 %v347, %v352
    %s355 = sld [smem:[#allocation3 + $0x2d]]
    %v356 = vstv %s355
    %v357 = vmul.f32 %v309, %v356
    %v359 = vrot.slane %v357, 3
    %v361 = vadd.f32 %v354, %v359
    %s362 = sld [smem:[#allocation6 + $0x9]]
    %v363 = vstv %s362
    %v364 = vadd.f32 %v361, %v363
    %v365 = vmax.f32 %v364, 0.0
    %s366 = sld [smem:[#allocation3 + $0x22]]
    %v367 = vstv %s366
    %v368 = vmul.f32 %v309, %v367
    %s369 = sld [smem:[#allocation3 + $0x26]]
    %v370 = vstv %s369
    %v371 = vmul.f32 %v309, %v370
    %v373 = vrot.slane %v371, 1
    %v375 = vadd.f32 %v368, %v373
    %s376 = sld [smem:[#allocation3 + $0x2a]]
    %v377 = vstv %s376
    %v378 = vmul.f32 %v309, %v377
    %v380 = vrot.slane %v378, 2
    %v382 = vadd.f32 %v375, %v380
    %s383 = sld [smem:[#allocation3 + $0x2e]]
    %v384 = vstv %s383
    %v385 = vmul.f32 %v309, %v384
    %v387 = vrot.slane %v385, 3
    %v389 = vadd.f32 %v382, %v387
    %s390 = sld [smem:[#allocation6 + $0xa]]
    %v391 = vstv %s390
    %v392 = vadd.f32 %v389, %v391
    %v393 = vmax.f32 %v392, 0.0
    %s394 = sld [smem:[#allocation3 + $0x23]]
    %v395 = vstv %s394
    %v396 = vmul.f32 %v309, %v395
    %s397 = sld [smem:[#allocation3 + $0x27]]
    %v398 = vstv %s397
    %v399 = vmul.f32 %v309, %v398
    %v401 = vrot.slane %v399, 1
    %v403 = vadd.f32 %v396, %v401
    %s404 = sld [smem:[#allocation3 + $0x2b]]
    %v405 = vstv %s404
    %v406 = vmul.f32 %v309, %v405
    %v408 = vrot.slane %v406, 2
    %v410 = vadd.f32 %v403, %v408
    %s411 = sld [smem:[#allocation3 + $0x2f]]
    %v412 = vstv %s411
    %v413 = vmul.f32 %v309, %v412
    %v415 = vrot.slane %v413, 3
    %v417 = vadd.f32 %v410, %v415
    %s418 = sld [smem:[#allocation6 + $0xb]]
    %v419 = vstv %s418
    %v420 = vadd.f32 %v417, %v419
    %v421 = vmax.f32 %v420, 0.0
    %v423 = vrot.slane %v365, 7
    %v426 = vrot.slane %v393, 6
    %v429 = vrot.slane %v421, 5
    %v431 = vsel %vm180, %v337, %v423
    %v432 = vsel %vm182, %v431, %v426
    %v433 = vsel %vm184, %v432, %v429
    %s434 = sld [smem:[#allocation3 + $0x30]]
    %v435 = vstv %s434
    %v436 = vmul.f32 %v433, %v435
    %s437 = sld [smem:[#allocation3 + $0x34]]
    %v438 = vstv %s437
    %v439 = vmul.f32 %v433, %v438
    %v441 = vrot.slane %v439, 1
    %v443 = vadd.f32 %v436, %v441
    %s444 = sld [smem:[#allocation3 + $0x38]]
    %v445 = vstv %s444
    %v446 = vmul.f32 %v433, %v445
    %v448 = vrot.slane %v446, 2
    %v450 = vadd.f32 %v443, %v448
    %s451 = sld [smem:[#allocation3 + $0x3c]]
    %v452 = vstv %s451
    %v453 = vmul.f32 %v433, %v452
    %v455 = vrot.slane %v453, 3
    %v457 = vadd.f32 %v450, %v455
    %s458 = sld [smem:[#allocation6 + $0xc]]
    %v459 = vstv %s458
    %v460 = vadd.f32 %v457, %v459
    %v461 = vmax.f32 %v460, 0.0
    %s462 = sld [smem:[#allocation3 + $0x31]]
    %v463 = vstv %s462
    %v464 = vmul.f32 %v433, %v463
    %s465 = sld [smem:[#allocation3 + $0x35]]
    %v466 = vstv %s465
    %v467 = vmul.f32 %v433, %v466
    %v469 = vrot.slane %v467, 1
    %v471 = vadd.f32 %v464, %v469
    %s472 = sld [smem:[#allocation3 + $0x39]]
    %v473 = vstv %s472
    %v474 = vmul.f32 %v433, %v473
    %v476 = vrot.slane %v474, 2
    %v478 = vadd.f32 %v471, %v476
    %s479 = sld [smem:[#allocation3 + $0x3d]]
    %v480 = vstv %s479
    %v481 = vmul.f32 %v433, %v480
    %v483 = vrot.slane %v481, 3
    %v485 = vadd.f32 %v478, %v483
    %s486 = sld [smem:[#allocation6 + $0xd]]
    %v487 = vstv %s486
    %v488 = vadd.f32 %v485, %v487
    %v489 = vmax.f32 %v488, 0.0
    %s490 = sld [smem:[#allocation3 + $0x32]]
    %v491 = vstv %s490
    %v492 = vmul.f32 %v433, %v491
    %s493 = sld [smem:[#allocation3 + $0x36]]
    %v494 = vstv %s493
    %v495 = vmul.f32 %v433, %v494
    %v497 = vrot.slane %v495, 1
    %v499 = vadd.f32 %v492, %v497
    %s500 = sld [smem:[#allocation3 + $0x3a]]
    %v501 = vstv %s500
    %v502 = vmul.f32 %v433, %v501
    %v504 = vrot.slane %v502, 2
    %v506 = vadd.f32 %v499, %v504
    %s507 = sld [smem:[#allocation3 + $0x3e]]
    %v508 = vstv %s507
    %v509 = vmul.f32 %v433, %v508
    %v511 = vrot.slane %v509, 3
    %v513 = vadd.f32 %v506, %v511
    %s514 = sld [smem:[#allocation6 + $0xe]]
    %v515 = vstv %s514
    %v516 = vadd.f32 %v513, %v515
    %v517 = vmax.f32 %v516, 0.0
    %s518 = sld [smem:[#allocation3 + $0x33]]
    %v519 = vstv %s518
    %v520 = vmul.f32 %v433, %v519
    %s521 = sld [smem:[#allocation3 + $0x37]]
    %v522 = vstv %s521
    %v523 = vmul.f32 %v433, %v522
    %v525 = vrot.slane %v523, 1
    %v527 = vadd.f32 %v520, %v525
    %s528 = sld [smem:[#allocation3 + $0x3b]]
    %v529 = vstv %s528
    %v530 = vmul.f32 %v433, %v529
    %v532 = vrot.slane %v530, 2
    %v534 = vadd.f32 %v527, %v532
    %s535 = sld [smem:[#allocation3 + $0x3f]]
    %v536 = vstv %s535
    %v537 = vmul.f32 %v433, %v536
    %v539 = vrot.slane %v537, 3
    %v541 = vadd.f32 %v534, %v539
    %s542 = sld [smem:[#allocation6 + $0xf]]
    %v543 = vstv %s542
    %v544 = vadd.f32 %v541, %v543
    %v545 = vmax.f32 %v544, 0.0
    %v547 = vrot.slane %v489, 7
    %v550 = vrot.slane %v517, 6
    %v553 = vrot.slane %v545, 5
    %v555 = vsel %vm180, %v461, %v547
    %v556 = vsel %vm182, %v555, %v550
    %v557 = vsel %vm184, %v556, %v553
    %s558 = sld [smem:[#allocation3 + $0x40]]
    %v559 = vstv %s558
    %v560 = vmul.f32 %v557, %v559
    %s561 = sld [smem:[#allocation3 + $0x44]]
    %v562 = vstv %s561
    %v563 = vmul.f32 %v557, %v562
    %v565 = vrot.slane %v563, 1
    %v567 = vadd.f32 %v560, %v565
    %s568 = sld [smem:[#allocation3 + $0x48]]
    %v569 = vstv %s568
    %v570 = vmul.f32 %v557, %v569
    %v572 = vrot.slane %v570, 2
    %v574 = vadd.f32 %v567, %v572
    %s575 = sld [smem:[#allocation3 + $0x4c]]
    %v576 = vstv %s575
    %v577 = vmul.f32 %v557, %v576
    %v579 = vrot.slane %v577, 3
    %v581 = vadd.f32 %v574, %v579
    %s582 = sld [smem:[#allocation6 + $0x10]]
    %v583 = vstv %s582
    %v584 = vadd.f32 %v581, %v583
    %v585 = vmax.f32 %v584, 0.0
    %s586 = sld [smem:[#allocation3 + $0x41]]
    %v587 = vstv %s586
    %v588 = vmul.f32 %v557, %v587
    %s589 = sld [smem:[#allocation3 + $0x45]]
    %v590 = vstv %s589
    %v591 = vmul.f32 %v557, %v590
    %v593 = vrot.slane %v591, 1
    %v595 = vadd.f32 %v588, %v593
    %s596 = sld [smem:[#allocation3 + $0x49]]
    %v597 = vstv %s596
    %v598 = vmul.f32 %v557, %v597
    %v600 = vrot.slane %v598, 2
    %v602 = vadd.f32 %v595, %v600
    %s603 = sld [smem:[#allocation3 + $0x4d]]
    %v604 = vstv %s603
    %v605 = vmul.f32 %v557, %v604
    %v607 = vrot.slane %v605, 3
    %v609 = vadd.f32 %v602, %v607
    %s610 = sld [smem:[#allocation6 + $0x11]]
    %v611 = vstv %s610
    %v612 = vadd.f32 %v609, %v611
    %v613 = vmax.f32 %v612, 0.0
    %s614 = sld [smem:[#allocation3 + $0x42]]
    %v615 = vstv %s614
    %v616 = vmul.f32 %v557, %v615
    %s617 = sld [smem:[#allocation3 + $0x46]]
    %v618 = vstv %s617
    %v619 = vmul.f32 %v557, %v618
    %v621 = vrot.slane %v619, 1
    %v623 = vadd.f32 %v616, %v621
    %s624 = sld [smem:[#allocation3 + $0x4a]]
    %v625 = vstv %s624
    %v626 = vmul.f32 %v557, %v625
    %v628 = vrot.slane %v626, 2
    %v630 = vadd.f32 %v623, %v628
    %s631 = sld [smem:[#allocation3 + $0x4e]]
    %v632 = vstv %s631
    %v633 = vmul.f32 %v557, %v632
    %v635 = vrot.slane %v633, 3
    %v637 = vadd.f32 %v630, %v635
    %s638 = sld [smem:[#allocation6 + $0x12]]
    %v639 = vstv %s638
    %v640 = vadd.f32 %v637, %v639
    %v641 = vmax.f32 %v640, 0.0
    %s642 = sld [smem:[#allocation3 + $0x43]]
    %v643 = vstv %s642
    %v644 = vmul.f32 %v557, %v643
    %s645 = sld [smem:[#allocation3 + $0x47]]
    %v646 = vstv %s645
    %v647 = vmul.f32 %v557, %v646
    %v649 = vrot.slane %v647, 1
    %v651 = vadd.f32 %v644, %v649
    %s652 = sld [smem:[#allocation3 + $0x4b]]
    %v653 = vstv %s652
    %v654 = vmul.f32 %v557, %v653
    %v656 = vrot.slane %v654, 2
    %v658 = vadd.f32 %v651, %v656
    %s659 = sld [smem:[#allocation3 + $0x4f]]
    %v660 = vstv %s659
    %v661 = vmul.f32 %v557, %v660
    %v663 = vrot.slane %v661, 3
    %v665 = vadd.f32 %v658, %v663
    %s666 = sld [smem:[#allocation6 + $0x13]]
    %v667 = vstv %s666
    %v668 = vadd.f32 %v665, %v667
    %v669 = vmax.f32 %v668, 0.0
    %v671 = vrot.slane %v613, 7
    %v674 = vrot.slane %v641, 6
    %v677 = vrot.slane %v669, 5
    %v679 = vsel %vm180, %v585, %v671
    %v680 = vsel %vm182, %v679, %v674
    %v681 = vsel %vm184, %v680, %v677
    %s682 = sld [smem:[#allocation3 + $0x50]]
    %v683 = vstv %s682
    %v684 = vmul.f32 %v681, %v683
    %s685 = sld [smem:[#allocation3 + $0x54]]
    %v686 = vstv %s685
    %v687 = vmul.f32 %v681, %v686
    %v689 = vrot.slane %v687, 1
    %v691 = vadd.f32 %v684, %v689
    %s692 = sld [smem:[#allocation3 + $0x58]]
    %v693 = vstv %s692
    %v694 = vmul.f32 %v681, %v693
    %v696 = vrot.slane %v694, 2
    %v698 = vadd.f32 %v691, %v696
    %s699 = sld [smem:[#allocation3 + $0x5c]]
    %v700 = vstv %s699
    %v701 = vmul.f32 %v681, %v700
    %v703 = vrot.slane %v701, 3
    %v705 = vadd.f32 %v698, %v703
    %s706 = sld [smem:[#allocation6 + $0x14]]
    %v707 = vstv %s706
    %v708 = vadd.f32 %v705, %v707
    %v709 = vmax.f32 %v708, 0.0
    %s710 = sld [smem:[#allocation3 + $0x51]]
    %v711 = vstv %s710
    %v712 = vmul.f32 %v681, %v711
    %s713 = sld [smem:[#allocation3 + $0x55]]
    %v714 = vstv %s713
    %v715 = vmul.f32 %v681, %v714
    %v717 = vrot.slane %v715, 1
    %v719 = vadd.f32 %v712, %v717
    %s720 = sld [smem:[#allocation3 + $0x59]]
    %v721 = vstv %s720
    %v722 = vmul.f32 %v681, %v721
    %v724 = vrot.slane %v722, 2
    %v726 = vadd.f32 %v719, %v724
    %s727 = sld [smem:[#allocation3 + $0x5d]]
    %v728 = vstv %s727
    %v729 = vmul.f32 %v681, %v728
    %v731 = vrot.slane %v729, 3
    %v733 = vadd.f32 %v726, %v731
    %s734 = sld [smem:[#allocation6 + $0x15]]
    %v735 = vstv %s734
    %v736 = vadd.f32 %v733, %v735
    %v737 = vmax.f32 %v736, 0.0
    %s738 = sld [smem:[#allocation3 + $0x52]]
    %v739 = vstv %s738
    %v740 = vmul.f32 %v681, %v739
    %s741 = sld [smem:[#allocation3 + $0x56]]
    %v742 = vstv %s741
    %v743 = vmul.f32 %v681, %v742
    %v745 = vrot.slane %v743, 1
    %v747 = vadd.f32 %v740, %v745
    %s748 = sld [smem:[#allocation3 + $0x5a]]
    %v749 = vstv %s748
    %v750 = vmul.f32 %v681, %v749
    %v752 = vrot.slane %v750, 2
    %v754 = vadd.f32 %v747, %v752
    %s755 = sld [smem:[#allocation3 + $0x5e]]
    %v756 = vstv %s755
    %v757 = vmul.f32 %v681, %v756
    %v759 = vrot.slane %v757, 3
    %v761 = vadd.f32 %v754, %v759
    %s762 = sld [smem:[#allocation6 + $0x16]]
    %v763 = vstv %s762
    %v764 = vadd.f32 %v761, %v763
    %v765 = vmax.f32 %v764, 0.0
    %s766 = sld [smem:[#allocation3 + $0x53]]
    %v767 = vstv %s766
    %v768 = vmul.f32 %v681, %v767
    %s769 = sld [smem:[#allocation3 + $0x57]]
    %v770 = vstv %s769
    %v771 = vmul.f32 %v681, %v770
    %v773 = vrot.slane %v771, 1
    %v775 = vadd.f32 %v768, %v773
    %s776 = sld [smem:[#allocation3 + $0x5b]]
    %v777 = vstv %s776
    %v778 = vmul.f32 %v681, %v777
    %v780 = vrot.slane %v778, 2
    %v782 = vadd.f32 %v775, %v780
    %s783 = sld [smem:[#allocation3 + $0x5f]]
    %v784 = vstv %s783
    %v785 = vmul.f32 %v681, %v784
    %v787 = vrot.slane %v785, 3
    %v789 = vadd.f32 %v782, %v787
    %s790 = sld [smem:[#allocation6 + $0x17]]
    %v791 = vstv %s790
    %v792 = vadd.f32 %v789, %v791
    %v793 = vmax.f32 %v792, 0.0
    %v795 = vrot.slane %v737, 7
    %v798 = vrot.slane %v765, 6
    %v801 = vrot.slane %v793, 5
    %v803 = vsel %vm180, %v709, %v795
    %v804 = vsel %vm182, %v803, %v798
    %v805 = vsel %vm184, %v804, %v801
    %s806 = sld [smem:[#allocation8]]
    %v807 = vstv %s806
    %v808 = vmul.f32 %v805, %v807
    %s809 = sld [smem:[#allocation8 + $0x1]]
    %v810 = vstv %s809
    %v811 = vmul.f32 %v805, %v810
    %v813 = vrot.slane %v811, 1
    %v815 = vadd.f32 %v808, %v813
    %s816 = sld [smem:[#allocation8 + $0x2]]
    %v817 = vstv %s816
    %v818 = vmul.f32 %v805, %v817
    %v820 = vrot.slane %v818, 2
    %v822 = vadd.f32 %v815, %v820
    %s823 = sld [smem:[#allocation8 + $0x3]]
    %v824 = vstv %s823
    %v825 = vmul.f32 %v805, %v824
    %v827 = vrot.slane %v825, 3
    %v829 = vadd.f32 %v822, %v827
    %s830 = sld [smem:[#allocation2]]
    %v831 = vstv %s830
    %v832 = vadd.f32 %v829, %v831
    %v833 = vxor.u32 %v832, 2147483648
    %v834 = vmul.f32 %v833, 1.442695
    %v835 = vpow.pop %v834
    %v836 = vadd.f32 %v835, 1.0
    %v837 = vrcp.pop %v836
    %v838 = vmul.f32 1.0, %v837
    %839 = vst [vmem:[#allocation9] sm:$0x1] %v838
    // Predicated region
    $region34: #{tpu_custom_call.1} parent=1 // pred_check
      _
    $region35: #{tpu_custom_call.1} parent=1 // pred_check_branch
      %841 = sbr.rel (0) target = $region37
    $region36: #{tpu_custom_call.1} parent=1 // pred_region
      %s843 = ssub.s32 16, 16
      %844 = vsyncadd [#allocation4], %s843
      %s846 = sshll.u32 [#allocation9], 4
      %s847 = int_to_ptr.vmem [resolvable:$true] %s846
      %849 = dma.vmem_to_hbm [thread:$0]  %s847, 16, %s5, [#allocation4]
    $region37: #{tpu_custom_call.1} parent=1 // pred_fallthru
      _
    // Predicated region
    $region38: #{tpu_custom_call.1} parent=1 // pred_check
      _
    $region39: #{tpu_custom_call.1} parent=1 // pred_check_branch
      %851 = sbr.rel (0) target = $region41
    $region40: #{tpu_custom_call.1} parent=1 // pred_region
      %852 = dma.done [#allocation4], 16
    $region41: #{tpu_custom_call.1} parent=1 // pred_fallthru
      _
    %853 = vsyncpa [#allocation4], 1
    %854 = vsyncpa [#allocation5], 1
    %855 = vsyncpa [#allocation7], 1

</llo_original>
